<compile_context>
chip_gen: v6e
topology: v6e:2x2x1
jax: 0.10.0
libtpu: 0.0.40
codegen_flags: <defaults>
</compile_context>

<pallas_src>
import functools

import jax
import jax.numpy as jnp
from jax.experimental import pallas as pl
from jax.experimental.pallas import tpu as pltpu

VOCAB = 21
EMB = 64
HID = 128
OUT = 3


def _sigmoid_via_tanh(x):
    # sigmoid(x) == 0.5 * tanh(0.5 * x) + 0.5  -> one EUP op instead of exp + recip.
    return 0.5 * jnp.tanh(0.5 * x) + 0.5


def lstm_chunk_kernel(xemb_ref, wih_ref, bias_ref, whh_ref, hseq_ref,
                      xproj_scr, h_state, c_state, *, t_chunk, b_pad, unroll):
    """One grid step == one chunk of `t_chunk` LSTM time steps.

    xemb_ref  : (t_chunk*b_pad, EMB)  bf16 embedded inputs, time-major
    wih_ref   : (EMB, 4H)             bf16 input weight (VMEM resident)
    bias_ref  : (1, 4H)               f32  b_ih + b_hh
    whh_ref   : (HID, 4H)             bf16 recurrent weight (VMEM resident)
    hseq_ref  : (t_chunk*b_pad, HID)  f32 lane-dense hidden-state output
    xproj_scr : (t_chunk*b_pad, 4H)   f32 scratch: chunk-local input projection
    h_state / c_state : (b_pad, HID)  f32 scratch, persists across chunks
    """
    chunk = pl.program_id(0)

    @pl.when(chunk == 0)
    def _():
        h_state[...] = jnp.zeros_like(h_state)
        c_state[...] = jnp.zeros_like(c_state)

    # Time-parallel input projection for the whole chunk: one big MXU matmul,
    # fused in-kernel so only 64-wide bf16 embeddings are streamed from HBM.
    xproj_scr[...] = (
        jnp.dot(xemb_ref[...], wih_ref[...], preferred_element_type=jnp.float32)
        + bias_ref[...])

    w_hh = whh_ref[...]  # bf16, hoisted: loaded once per chunk

    def step(t, carry):
        h, c = carry
        row = pl.multiple_of(t * b_pad, 8)            # 8-aligned sublane offset
        gates = xproj_scr[pl.ds(row, b_pad), :] + jnp.dot(
            h.astype(jnp.bfloat16), w_hh, preferred_element_type=jnp.float32)
        i_g = _sigmoid_via_tanh(gates[:, 0 * HID:1 * HID])
        f_g = _sigmoid_via_tanh(gates[:, 1 * HID:2 * HID])
        g_g = jnp.tanh(gates[:, 2 * HID:3 * HID])
        o_g = _sigmoid_via_tanh(gates[:, 3 * HID:4 * HID])
        c_new = f_g * c + i_g * g_g
        h_new = o_g * jnp.tanh(c_new)
        hseq_ref[pl.ds(row, b_pad), :] = h_new        # lane-dense (b_pad, 128) store
        return (h_new, c_new)

    h_f, c_f = jax.lax.fori_loop(0, t_chunk, step,
                                 (h_state[...], c_state[...]),
                                 unroll=unroll)
    h_state[...] = h_f
    c_state[...] = c_f


def lstm_pallas(x_emb_2d, w_ih_t, bias2d, w_hh_t, *, t_chunk, b_pad, unroll=8):
    """x_emb_2d: (T_pad*b_pad, EMB) bf16, time-major.  Returns (T_pad*b_pad, HID) f32."""
    rows, e = x_emb_2d.shape
    assert e == EMB
    chunk_rows = t_chunk * b_pad
    assert rows % chunk_rows == 0
    n_chunks = rows // chunk_rows
    kernel = functools.partial(lstm_chunk_kernel, t_chunk=t_chunk, b_pad=b_pad,
                               unroll=min(unroll, t_chunk))
    return pl.pallas_call(
        kernel,
        out_shape=jax.ShapeDtypeStruct((rows, HID), jnp.float32),
        grid_spec=pltpu.PrefetchScalarGridSpec(
            num_scalar_prefetch=0,
            grid=(n_chunks,),
            in_specs=[
                pl.BlockSpec((chunk_rows, EMB), lambda c: (c, 0)),     # x_emb chunk
                pl.BlockSpec((EMB, 4 * HID), lambda c: (0, 0)),        # W_ih^T
                pl.BlockSpec((1, 4 * HID), lambda c: (0, 0)),          # b_ih + b_hh
                pl.BlockSpec((HID, 4 * HID), lambda c: (0, 0)),        # W_hh^T
            ],
            out_specs=pl.BlockSpec((chunk_rows, HID), lambda c: (c, 0)),
            scratch_shapes=[
                pltpu.VMEM((chunk_rows, 4 * HID), jnp.float32),  # chunk X_proj
                pltpu.VMEM((b_pad, HID), jnp.float32),           # h state
                pltpu.VMEM((b_pad, HID), jnp.float32),           # c state
            ],
        ),
        compiler_params=pltpu.CompilerParams(
            dimension_semantics=("arbitrary",),      # time chunks are sequential
            vmem_limit_bytes=40 * 1024 * 1024,       # headroom for large t_chunk
        ),
    )(x_emb_2d, w_ih_t, bias2d, w_hh_t)


def init_params(key):
    ks = jax.random.split(key, 7)
    emb = jax.random.normal(ks[0], (VOCAB, EMB), jnp.float32) * 0.1
    emb = emb.at[0].set(0.0)                             # padding_idx=0 -> zero row
    w_ih = jax.random.normal(ks[1], (4 * HID, EMB), jnp.float32) * 0.05
    w_hh = jax.random.normal(ks[2], (4 * HID, HID), jnp.float32) * 0.05
    b_ih = jax.random.normal(ks[3], (4 * HID,), jnp.float32) * 0.05
    b_hh = jax.random.normal(ks[4], (4 * HID,), jnp.float32) * 0.05
    fc_w = jax.random.normal(ks[5], (OUT, HID), jnp.float32) * 0.05
    fc_b = jax.random.normal(ks[6], (OUT,), jnp.float32) * 0.05
    return dict(emb=emb, w_ih=w_ih, w_hh=w_hh, b_ih=b_ih, b_hh=b_hh,
                fc_w=fc_w, fc_b=fc_b)


def forward(params, tokens, *, t_chunk=256):
    """tokens: (B, T) int32.  Returns (B, T, 3) f32, matching PyTorch semantics."""
    B, T = tokens.shape

    # Pad batch up to a multiple of 8 (fill sublane blocks; padded rows use token 0
    # -> zero embedding row -> bounded, independent sequences that are discarded).
    b_pad = ((B + 7) // 8) * 8
    # Choose the chunk length: cap so the chunk X_proj scratch stays <= ~8 MiB and
    # keep chunk_rows a multiple of 16 (bf16 sublane packing); never exceed T by >1.
    tc = min(t_chunk, max(2, 4096 // b_pad), ((T + 1) // 2) * 2)
    tc = max(2, (tc // 2) * 2)
    t_pad = pl.cdiv(T, tc) * tc

    tok = tokens
    if b_pad != B:
        tok = jnp.pad(tok, ((0, b_pad - B), (0, 0)))               # pad with token 0

    # Gather embeddings directly in time-major (T, B, E) layout (no extra transpose).
    x_tbe = jnp.take(params["emb"], tok.T, axis=0)                 # (T, b_pad, EMB)
    if t_pad != T:
        # Padded tail steps are causal-safe: computed then discarded.
        x_tbe = jnp.pad(x_tbe, ((0, t_pad - T), (0, 0), (0, 0)))
    x2d = x_tbe.reshape(t_pad * b_pad, EMB).astype(jnp.bfloat16)   # 64-wide bf16 stream

    w_ih_t = params["w_ih"].T.astype(jnp.bfloat16)                 # (EMB, 4H) bf16
    w_hh_t = params["w_hh"].T.astype(jnp.bfloat16)                 # (HID, 4H) bf16
    bias2d = (params["b_ih"] + params["b_hh"]).reshape(1, 4 * HID) # f32

    h2d = lstm_pallas(x2d, w_ih_t, bias2d, w_hh_t, t_chunk=tc, b_pad=b_pad)

    # 128->3 Linear BEFORE the (T,B)->(B,T) transpose: transpose moves only 3-wide data.
    y2d = h2d @ params["fc_w"].T + params["fc_b"]                  # (t_pad*b_pad, 3)
    y = y2d.reshape(t_pad, b_pad, OUT)[:T, :B]                     # (T, B, 3)
    return jnp.transpose(y, (1, 0, 2))                             # (B, T, 3)


def forward_reference(params, tokens):
    """Pure-JAX f32 reference (lax.scan LSTM) for correctness checking."""
    x_emb = jnp.take(params["emb"], tokens, axis=0)                # (B, T, E)
    B, T, _ = x_emb.shape
    w_ih_t = params["w_ih"].T
    w_hh_t = params["w_hh"].T
    b = params["b_ih"] + params["b_hh"]

    def step(carry, x_t):
        h, c = carry
        gates = x_t @ w_ih_t + h @ w_hh_t + b
        i = jax.nn.sigmoid(gates[:, 0 * HID:1 * HID])
        f = jax.nn.sigmoid(gates[:, 1 * HID:2 * HID])
        g = jnp.tanh(gates[:, 2 * HID:3 * HID])
        o = jax.nn.sigmoid(gates[:, 3 * HID:4 * HID])
        c_new = f * c + i * g
        h_new = o * jnp.tanh(c_new)
        return (h_new, c_new), h_new

    h0 = jnp.zeros((B, HID), jnp.float32)
    c0 = jnp.zeros((B, HID), jnp.float32)
    _, h_seq = jax.lax.scan(step, (h0, c0), jnp.transpose(x_emb, (1, 0, 2)))
    h_seq = jnp.transpose(h_seq, (1, 0, 2))                        # (B, T, H)
    return h_seq @ params["fc_w"].T + params["fc_b"]


if __name__ == "__main__":
    key = jax.random.PRNGKey(0)
    pkey, tkey = jax.random.split(key)
    params = init_params(pkey)

    B, T = 2, 8
    tokens = jax.random.randint(tkey, (B, T), 0, VOCAB, dtype=jnp.int32)

    ref = jax.block_until_ready(forward_reference(params, tokens))

    # Multi-chunk run (t_chunk=4 -> T=8 spans 2 chunks): exercises h/c carry across
    # grid steps (the case the previous test never hit).
    out_mc = jax.block_until_ready(forward(params, tokens, t_chunk=4))
    assert out_mc.shape == (B, T, OUT), out_mc.shape
    assert jnp.allclose(out_mc, ref, atol=2e-2, rtol=2e-2), (
        "multi-chunk mismatch, max abs err = "
        f"{float(jnp.max(jnp.abs(out_mc - ref)))}")

    # Default-config run (single chunk at this T).
    out = jax.block_until_ready(forward(params, tokens))
    assert out.shape == (B, T, OUT), out.shape
    assert jnp.allclose(out, ref, atol=2e-2, rtol=2e-2), (
        "single-chunk mismatch, max abs err = "
        f"{float(jnp.max(jnp.abs(out - ref)))}")

    print("KERNEL_OK")
</pallas_src>

<mosaic_0001>
module attributes {stable_mosaic.version = 11 : i64} {
  func.func @lstm_chunk_kernel(%arg0: i32, %arg1: memref<32x64xbf16, #tpu.memory_space<vmem>>, %arg2: memref<64x512xbf16, #tpu.memory_space<vmem>>, %arg3: memref<1x512xf32, #tpu.memory_space<vmem>>, %arg4: memref<128x512xbf16, #tpu.memory_space<vmem>>, %arg5: memref<32x128xf32, #tpu.memory_space<vmem>>, %arg6: memref<32x512xf32, #tpu.memory_space<vmem>>, %arg7: memref<8x128xf32, #tpu.memory_space<vmem>>, %arg8: memref<8x128xf32, #tpu.memory_space<vmem>>) attributes {dimension_semantics = [#tpu.dimension_semantics<arbitrary>], iteration_bounds = array<i64: 2>, scalar_prefetch = 0 : i64, scratch_operands = 3 : i64, tpu.core_type = #tpu.core_type<tc>, window_params = [{transform_indices = @transform_0, window_bounds = array<i64: 32, 64>}, {pipeline_mode = #tpu.pipeline_mode<synchronous>, transform_indices = @transform_1, window_bounds = array<i64: 64, 512>}, {pipeline_mode = #tpu.pipeline_mode<synchronous>, transform_indices = @transform_2, window_bounds = array<i64: 1, 512>}, {pipeline_mode = #tpu.pipeline_mode<synchronous>, transform_indices = @transform_3, window_bounds = array<i64: 128, 512>}, {transform_indices = @transform_4, window_bounds = array<i64: 32, 128>}]} {
    %c0_i32 = arith.constant 0 : i32
    %0 = arith.cmpi eq, %arg0, %c0_i32 : i32
    %1 = arith.extui %0 : i1 to i32
    %c0_i32_0 = arith.constant 0 : i32
    %2 = arith.cmpi ne, %1, %c0_i32_0 : i32
    scf.if %2 {
      %cst_70 = arith.constant 0.000000e+00 : f32
      %175 = vector.broadcast %cst_70 : f32 to vector<8x128xf32>
      %c0_71 = arith.constant 0 : index
      %c0_72 = arith.constant 0 : index
      %176 = vector.load %arg7[%c0_71, %c0_72] : memref<8x128xf32, #tpu.memory_space<vmem>>, vector<8x128xf32>
      tpu.vector_store %arg7[%c0_71, %c0_72], %175 {strides = array<i32>} : memref<8x128xf32, #tpu.memory_space<vmem>>, vector<8x128xf32>,
      %cst_73 = arith.constant 0.000000e+00 : f32
      %177 = vector.broadcast %cst_73 : f32 to vector<8x128xf32>
      %c0_74 = arith.constant 0 : index
      %c0_75 = arith.constant 0 : index
      %178 = vector.load %arg8[%c0_74, %c0_75] : memref<8x128xf32, #tpu.memory_space<vmem>>, vector<8x128xf32>
      tpu.vector_store %arg8[%c0_74, %c0_75], %177 {strides = array<i32>} : memref<8x128xf32, #tpu.memory_space<vmem>>, vector<8x128xf32>,
    } else {
    }
    %c0 = arith.constant 0 : index
    %c0_1 = arith.constant 0 : index
    %3 = vector.load %arg1[%c0, %c0_1] : memref<32x64xbf16, #tpu.memory_space<vmem>>, vector<32x64xbf16>
    %c0_2 = arith.constant 0 : index
    %c0_3 = arith.constant 0 : index
    %4 = vector.load %arg2[%c0_2, %c0_3] : memref<64x512xbf16, #tpu.memory_space<vmem>>, vector<64x512xbf16>
    %cst = arith.constant dense<0.000000e+00> : vector<32x512xf32>
    %5 = tpu.matmul %3, %4, %cst {dimension_numbers = #tpu.dot_dimension_numbers<[1], [0], [0], [1], [0, 0, 1, 1], [], []>} : vector<32x64xbf16>, vector<64x512xbf16>, vector<32x512xf32> -> vector<32x512xf32>
    %c0_4 = arith.constant 0 : index
    %c0_5 = arith.constant 0 : index
    %6 = vector.load %arg3[%c0_4, %c0_5] : memref<1x512xf32, #tpu.memory_space<vmem>>, vector<1x512xf32>
    %7 = vector.broadcast %6 : vector<1x512xf32> to vector<32x512xf32>
    %8 = arith.addf %5, %7 : vector<32x512xf32>
    %c0_6 = arith.constant 0 : index
    %c0_7 = arith.constant 0 : index
    %9 = vector.load %arg6[%c0_6, %c0_7] : memref<32x512xf32, #tpu.memory_space<vmem>>, vector<32x512xf32>
    tpu.vector_store %arg6[%c0_6, %c0_7], %8 {strides = array<i32>} : memref<32x512xf32, #tpu.memory_space<vmem>>, vector<32x512xf32>,
    %c0_8 = arith.constant 0 : index
    %c0_9 = arith.constant 0 : index
    %10 = vector.load %arg4[%c0_8, %c0_9] : memref<128x512xbf16, #tpu.memory_space<vmem>>, vector<128x512xbf16>
    %c0_10 = arith.constant 0 : index
    %c0_11 = arith.constant 0 : index
    %11 = vector.load %arg7[%c0_10, %c0_11] : memref<8x128xf32, #tpu.memory_space<vmem>>, vector<8x128xf32>
    %c0_12 = arith.constant 0 : index
    %c0_13 = arith.constant 0 : index
    %12 = vector.load %arg8[%c0_12, %c0_13] : memref<8x128xf32, #tpu.memory_space<vmem>>, vector<8x128xf32>
    %c0_i32_14 = arith.constant 0 : i32
    %c8_i32 = arith.constant 8 : i32
    %13 = arith.muli %c0_i32_14, %c8_i32 : i32
    %14 = tpu.assume_multiple %13, 8 : i32
    %15 = arith.index_cast %14 : i32 to index
    %c0_15 = arith.constant 0 : index
    %16 = vector.load %arg6[%15, %c0_15] : memref<32x512xf32, #tpu.memory_space<vmem>>, vector<8x512xf32>
    %17 = arith.truncf %11 : vector<8x128xf32> to vector<8x128xbf16>
    %cst_16 = arith.constant dense<0.000000e+00> : vector<8x512xf32>
    %18 = tpu.matmul %17, %10, %cst_16 {dimension_numbers = #tpu.dot_dimension_numbers<[1], [0], [0], [1], [0, 0, 1, 1], [], []>} : vector<8x128xbf16>, vector<128x512xbf16>, vector<8x512xf32> -> vector<8x512xf32>
    %19 = arith.addf %16, %18 : vector<8x512xf32>
    %20 = vector.extract_strided_slice %19 {offsets = [0, 0], sizes = [8, 128], strides = [1, 1]} : vector<8x512xf32> to vector<8x128xf32>
    %cst_17 = arith.constant 5.000000e-01 : f32
    %21 = vector.broadcast %cst_17 : f32 to vector<8x128xf32>
    %22 = arith.mulf %21, %20 : vector<8x128xf32>
    %23 = math.tanh %22 : vector<8x128xf32>
    %cst_18 = arith.constant 5.000000e-01 : f32
    %24 = vector.broadcast %cst_18 : f32 to vector<8x128xf32>
    %25 = arith.mulf %24, %23 : vector<8x128xf32>
    %cst_19 = arith.constant 5.000000e-01 : f32
    %26 = vector.broadcast %cst_19 : f32 to vector<8x128xf32>
    %27 = arith.addf %25, %26 : vector<8x128xf32>
    %28 = vector.extract_strided_slice %19 {offsets = [0, 128], sizes = [8, 128], strides = [1, 1]} : vector<8x512xf32> to vector<8x128xf32>
    %cst_20 = arith.constant 5.000000e-01 : f32
    %29 = vector.broadcast %cst_20 : f32 to vector<8x128xf32>
    %30 = arith.mulf %29, %28 : vector<8x128xf32>
    %31 = math.tanh %30 : vector<8x128xf32>
    %cst_21 = arith.constant 5.000000e-01 : f32
    %32 = vector.broadcast %cst_21 : f32 to vector<8x128xf32>
    %33 = arith.mulf %32, %31 : vector<8x128xf32>
    %cst_22 = arith.constant 5.000000e-01 : f32
    %34 = vector.broadcast %cst_22 : f32 to vector<8x128xf32>
    %35 = arith.addf %33, %34 : vector<8x128xf32>
    %36 = vector.extract_strided_slice %19 {offsets = [0, 256], sizes = [8, 128], strides = [1, 1]} : vector<8x512xf32> to vector<8x128xf32>
    %37 = math.tanh %36 : vector<8x128xf32>
    %38 = vector.extract_strided_slice %19 {offsets = [0, 384], sizes = [8, 128], strides = [1, 1]} : vector<8x512xf32> to vector<8x128xf32>
    %cst_23 = arith.constant 5.000000e-01 : f32
    %39 = vector.broadcast %cst_23 : f32 to vector<8x128xf32>
    %40 = arith.mulf %39, %38 : vector<8x128xf32>
    %41 = math.tanh %40 : vector<8x128xf32>
    %cst_24 = arith.constant 5.000000e-01 : f32
    %42 = vector.broadcast %cst_24 : f32 to vector<8x128xf32>
    %43 = arith.mulf %42, %41 : vector<8x128xf32>
    %cst_25 = arith.constant 5.000000e-01 : f32
    %44 = vector.broadcast %cst_25 : f32 to vector<8x128xf32>
    %45 = arith.addf %43, %44 : vector<8x128xf32>
    %46 = arith.mulf %35, %12 : vector<8x128xf32>
    %47 = arith.mulf %27, %37 : vector<8x128xf32>
    %48 = arith.addf %46, %47 : vector<8x128xf32>
    %49 = math.tanh %48 : vector<8x128xf32>
    %50 = arith.mulf %45, %49 : vector<8x128xf32>
    %51 = arith.index_cast %14 : i32 to index
    %c0_26 = arith.constant 0 : index
    %52 = vector.load %arg5[%51, %c0_26] : memref<32x128xf32, #tpu.memory_space<vmem>>, vector<8x128xf32>
    tpu.vector_store %arg5[%51, %c0_26], %50 {strides = array<i32>} : memref<32x128xf32, #tpu.memory_space<vmem>>, vector<8x128xf32>,
    %c1_i32 = arith.constant 1 : i32
    %c8_i32_27 = arith.constant 8 : i32
    %53 = arith.muli %c1_i32, %c8_i32_27 : i32
    %54 = tpu.assume_multiple %53, 8 : i32
    %55 = arith.index_cast %54 : i32 to index
    %c0_28 = arith.constant 0 : index
    %56 = vector.load %arg6[%55, %c0_28] : memref<32x512xf32, #tpu.memory_space<vmem>>, vector<8x512xf32>
    %57 = arith.truncf %50 : vector<8x128xf32> to vector<8x128xbf16>
    %cst_29 = arith.constant dense<0.000000e+00> : vector<8x512xf32>
    %58 = tpu.matmul %57, %10, %cst_29 {dimension_numbers = #tpu.dot_dimension_numbers<[1], [0], [0], [1], [0, 0, 1, 1], [], []>} : vector<8x128xbf16>, vector<128x512xbf16>, vector<8x512xf32> -> vector<8x512xf32>
    %59 = arith.addf %56, %58 : vector<8x512xf32>
    %60 = vector.extract_strided_slice %59 {offsets = [0, 0], sizes = [8, 128], strides = [1, 1]} : vector<8x512xf32> to vector<8x128xf32>
    %cst_30 = arith.constant 5.000000e-01 : f32
    %61 = vector.broadcast %cst_30 : f32 to vector<8x128xf32>
    %62 = arith.mulf %61, %60 : vector<8x128xf32>
    %63 = math.tanh %62 : vector<8x128xf32>
    %cst_31 = arith.constant 5.000000e-01 : f32
    %64 = vector.broadcast %cst_31 : f32 to vector<8x128xf32>
    %65 = arith.mulf %64, %63 : vector<8x128xf32>
    %cst_32 = arith.constant 5.000000e-01 : f32
    %66 = vector.broadcast %cst_32 : f32 to vector<8x128xf32>
    %67 = arith.addf %65, %66 : vector<8x128xf32>
    %68 = vector.extract_strided_slice %59 {offsets = [0, 128], sizes = [8, 128], strides = [1, 1]} : vector<8x512xf32> to vector<8x128xf32>
    %cst_33 = arith.constant 5.000000e-01 : f32
    %69 = vector.broadcast %cst_33 : f32 to vector<8x128xf32>
    %70 = arith.mulf %69, %68 : vector<8x128xf32>
    %71 = math.tanh %70 : vector<8x128xf32>
    %cst_34 = arith.constant 5.000000e-01 : f32
    %72 = vector.broadcast %cst_34 : f32 to vector<8x128xf32>
    %73 = arith.mulf %72, %71 : vector<8x128xf32>
    %cst_35 = arith.constant 5.000000e-01 : f32
    %74 = vector.broadcast %cst_35 : f32 to vector<8x128xf32>
    %75 = arith.addf %73, %74 : vector<8x128xf32>
    %76 = vector.extract_strided_slice %59 {offsets = [0, 256], sizes = [8, 128], strides = [1, 1]} : vector<8x512xf32> to vector<8x128xf32>
    %77 = math.tanh %76 : vector<8x128xf32>
    %78 = vector.extract_strided_slice %59 {offsets = [0, 384], sizes = [8, 128], strides = [1, 1]} : vector<8x512xf32> to vector<8x128xf32>
    %cst_36 = arith.constant 5.000000e-01 : f32
    %79 = vector.broadcast %cst_36 : f32 to vector<8x128xf32>
    %80 = arith.mulf %79, %78 : vector<8x128xf32>
    %81 = math.tanh %80 : vector<8x128xf32>
    %cst_37 = arith.constant 5.000000e-01 : f32
    %82 = vector.broadcast %cst_37 : f32 to vector<8x128xf32>
    %83 = arith.mulf %82, %81 : vector<8x128xf32>
    %cst_38 = arith.constant 5.000000e-01 : f32
    %84 = vector.broadcast %cst_38 : f32 to vector<8x128xf32>
    %85 = arith.addf %83, %84 : vector<8x128xf32>
    %86 = arith.mulf %75, %48 : vector<8x128xf32>
    %87 = arith.mulf %67, %77 : vector<8x128xf32>
    %88 = arith.addf %86, %87 : vector<8x128xf32>
    %89 = math.tanh %88 : vector<8x128xf32>
    %90 = arith.mulf %85, %89 : vector<8x128xf32>
    %91 = arith.index_cast %54 : i32 to index
    %c0_39 = arith.constant 0 : index
    %92 = vector.load %arg5[%91, %c0_39] : memref<32x128xf32, #tpu.memory_space<vmem>>, vector<8x128xf32>
    tpu.vector_store %arg5[%91, %c0_39], %90 {strides = array<i32>} : memref<32x128xf32, #tpu.memory_space<vmem>>, vector<8x128xf32>,
    %c2_i32 = arith.constant 2 : i32
    %c8_i32_40 = arith.constant 8 : i32
    %93 = arith.muli %c2_i32, %c8_i32_40 : i32
    %94 = tpu.assume_multiple %93, 8 : i32
    %95 = arith.index_cast %94 : i32 to index
    %c0_41 = arith.constant 0 : index
    %96 = vector.load %arg6[%95, %c0_41] : memref<32x512xf32, #tpu.memory_space<vmem>>, vector<8x512xf32>
    %97 = arith.truncf %90 : vector<8x128xf32> to vector<8x128xbf16>
    %cst_42 = arith.constant dense<0.000000e+00> : vector<8x512xf32>
    %98 = tpu.matmul %97, %10, %cst_42 {dimension_numbers = #tpu.dot_dimension_numbers<[1], [0], [0], [1], [0, 0, 1, 1], [], []>} : vector<8x128xbf16>, vector<128x512xbf16>, vector<8x512xf32> -> vector<8x512xf32>
    %99 = arith.addf %96, %98 : vector<8x512xf32>
    %100 = vector.extract_strided_slice %99 {offsets = [0, 0], sizes = [8, 128], strides = [1, 1]} : vector<8x512xf32> to vector<8x128xf32>
    %cst_43 = arith.constant 5.000000e-01 : f32
    %101 = vector.broadcast %cst_43 : f32 to vector<8x128xf32>
    %102 = arith.mulf %101, %100 : vector<8x128xf32>
    %103 = math.tanh %102 : vector<8x128xf32>
    %cst_44 = arith.constant 5.000000e-01 : f32
    %104 = vector.broadcast %cst_44 : f32 to vector<8x128xf32>
    %105 = arith.mulf %104, %103 : vector<8x128xf32>
    %cst_45 = arith.constant 5.000000e-01 : f32
    %106 = vector.broadcast %cst_45 : f32 to vector<8x128xf32>
    %107 = arith.addf %105, %106 : vector<8x128xf32>
    %108 = vector.extract_strided_slice %99 {offsets = [0, 128], sizes = [8, 128], strides = [1, 1]} : vector<8x512xf32> to vector<8x128xf32>
    %cst_46 = arith.constant 5.000000e-01 : f32
    %109 = vector.broadcast %cst_46 : f32 to vector<8x128xf32>
    %110 = arith.mulf %109, %108 : vector<8x128xf32>
    %111 = math.tanh %110 : vector<8x128xf32>
    %cst_47 = arith.constant 5.000000e-01 : f32
    %112 = vector.broadcast %cst_47 : f32 to vector<8x128xf32>
    %113 = arith.mulf %112, %111 : vector<8x128xf32>
    %cst_48 = arith.constant 5.000000e-01 : f32
    %114 = vector.broadcast %cst_48 : f32 to vector<8x128xf32>
    %115 = arith.addf %113, %114 : vector<8x128xf32>
    %116 = vector.extract_strided_slice %99 {offsets = [0, 256], sizes = [8, 128], strides = [1, 1]} : vector<8x512xf32> to vector<8x128xf32>
    %117 = math.tanh %116 : vector<8x128xf32>
    %118 = vector.extract_strided_slice %99 {offsets = [0, 384], sizes = [8, 128], strides = [1, 1]} : vector<8x512xf32> to vector<8x128xf32>
    %cst_49 = arith.constant 5.000000e-01 : f32
    %119 = vector.broadcast %cst_49 : f32 to vector<8x128xf32>
    %120 = arith.mulf %119, %118 : vector<8x128xf32>
    %121 = math.tanh %120 : vector<8x128xf32>
    %cst_50 = arith.constant 5.000000e-01 : f32
    %122 = vector.broadcast %cst_50 : f32 to vector<8x128xf32>
    %123 = arith.mulf %122, %121 : vector<8x128xf32>
    %cst_51 = arith.constant 5.000000e-01 : f32
    %124 = vector.broadcast %cst_51 : f32 to vector<8x128xf32>
    %125 = arith.addf %123, %124 : vector<8x128xf32>
    %126 = arith.mulf %115, %88 : vector<8x128xf32>
    %127 = arith.mulf %107, %117 : vector<8x128xf32>
    %128 = arith.addf %126, %127 : vector<8x128xf32>
    %129 = math.tanh %128 : vector<8x128xf32>
    %130 = arith.mulf %125, %129 : vector<8x128xf32>
    %131 = arith.index_cast %94 : i32 to index
    %c0_52 = arith.constant 0 : index
    %132 = vector.load %arg5[%131, %c0_52] : memref<32x128xf32, #tpu.memory_space<vmem>>, vector<8x128xf32>
    tpu.vector_store %arg5[%131, %c0_52], %130 {strides = array<i32>} : memref<32x128xf32, #tpu.memory_space<vmem>>, vector<8x128xf32>,
    %c3_i32 = arith.constant 3 : i32
    %c8_i32_53 = arith.constant 8 : i32
    %133 = arith.muli %c3_i32, %c8_i32_53 : i32
    %134 = tpu.assume_multiple %133, 8 : i32
    %135 = arith.index_cast %134 : i32 to index
    %c0_54 = arith.constant 0 : index
    %136 = vector.load %arg6[%135, %c0_54] : memref<32x512xf32, #tpu.memory_space<vmem>>, vector<8x512xf32>
    %137 = arith.truncf %130 : vector<8x128xf32> to vector<8x128xbf16>
    %cst_55 = arith.constant dense<0.000000e+00> : vector<8x512xf32>
    %138 = tpu.matmul %137, %10, %cst_55 {dimension_numbers = #tpu.dot_dimension_numbers<[1], [0], [0], [1], [0, 0, 1, 1], [], []>} : vector<8x128xbf16>, vector<128x512xbf16>, vector<8x512xf32> -> vector<8x512xf32>
    %139 = arith.addf %136, %138 : vector<8x512xf32>
    %140 = vector.extract_strided_slice %139 {offsets = [0, 0], sizes = [8, 128], strides = [1, 1]} : vector<8x512xf32> to vector<8x128xf32>
    %cst_56 = arith.constant 5.000000e-01 : f32
    %141 = vector.broadcast %cst_56 : f32 to vector<8x128xf32>
    %142 = arith.mulf %141, %140 : vector<8x128xf32>
    %143 = math.tanh %142 : vector<8x128xf32>
    %cst_57 = arith.constant 5.000000e-01 : f32
    %144 = vector.broadcast %cst_57 : f32 to vector<8x128xf32>
    %145 = arith.mulf %144, %143 : vector<8x128xf32>
    %cst_58 = arith.constant 5.000000e-01 : f32
    %146 = vector.broadcast %cst_58 : f32 to vector<8x128xf32>
    %147 = arith.addf %145, %146 : vector<8x128xf32>
    %148 = vector.extract_strided_slice %139 {offsets = [0, 128], sizes = [8, 128], strides = [1, 1]} : vector<8x512xf32> to vector<8x128xf32>
    %cst_59 = arith.constant 5.000000e-01 : f32
    %149 = vector.broadcast %cst_59 : f32 to vector<8x128xf32>
    %150 = arith.mulf %149, %148 : vector<8x128xf32>
    %151 = math.tanh %150 : vector<8x128xf32>
    %cst_60 = arith.constant 5.000000e-01 : f32
    %152 = vector.broadcast %cst_60 : f32 to vector<8x128xf32>
    %153 = arith.mulf %152, %151 : vector<8x128xf32>
    %cst_61 = arith.constant 5.000000e-01 : f32
    %154 = vector.broadcast %cst_61 : f32 to vector<8x128xf32>
    %155 = arith.addf %153, %154 : vector<8x128xf32>
    %156 = vector.extract_strided_slice %139 {offsets = [0, 256], sizes = [8, 128], strides = [1, 1]} : vector<8x512xf32> to vector<8x128xf32>
    %157 = math.tanh %156 : vector<8x128xf32>
    %158 = vector.extract_strided_slice %139 {offsets = [0, 384], sizes = [8, 128], strides = [1, 1]} : vector<8x512xf32> to vector<8x128xf32>
    %cst_62 = arith.constant 5.000000e-01 : f32
    %159 = vector.broadcast %cst_62 : f32 to vector<8x128xf32>
    %160 = arith.mulf %159, %158 : vector<8x128xf32>
    %161 = math.tanh %160 : vector<8x128xf32>
    %cst_63 = arith.constant 5.000000e-01 : f32
    %162 = vector.broadcast %cst_63 : f32 to vector<8x128xf32>
    %163 = arith.mulf %162, %161 : vector<8x128xf32>
    %cst_64 = arith.constant 5.000000e-01 : f32
    %164 = vector.broadcast %cst_64 : f32 to vector<8x128xf32>
    %165 = arith.addf %163, %164 : vector<8x128xf32>
    %166 = arith.mulf %155, %128 : vector<8x128xf32>
    %167 = arith.mulf %147, %157 : vector<8x128xf32>
    %168 = arith.addf %166, %167 : vector<8x128xf32>
    %169 = math.tanh %168 : vector<8x128xf32>
    %170 = arith.mulf %165, %169 : vector<8x128xf32>
    %171 = arith.index_cast %134 : i32 to index
    %c0_65 = arith.constant 0 : index
    %172 = vector.load %arg5[%171, %c0_65] : memref<32x128xf32, #tpu.memory_space<vmem>>, vector<8x128xf32>
    tpu.vector_store %arg5[%171, %c0_65], %170 {strides = array<i32>} : memref<32x128xf32, #tpu.memory_space<vmem>>, vector<8x128xf32>,
    %c4_i32 = arith.constant 4 : i32
    %c0_66 = arith.constant 0 : index
    %c0_67 = arith.constant 0 : index
    %173 = vector.load %arg7[%c0_66, %c0_67] : memref<8x128xf32, #tpu.memory_space<vmem>>, vector<8x128xf32>
    tpu.vector_store %arg7[%c0_66, %c0_67], %170 {strides = array<i32>} : memref<8x128xf32, #tpu.memory_space<vmem>>, vector<8x128xf32>,
    %c0_68 = arith.constant 0 : index
    %c0_69 = arith.constant 0 : index
    %174 = vector.load %arg8[%c0_68, %c0_69] : memref<8x128xf32, #tpu.memory_space<vmem>>, vector<8x128xf32>
    tpu.vector_store %arg8[%c0_68, %c0_69], %168 {strides = array<i32>} : memref<8x128xf32, #tpu.memory_space<vmem>>, vector<8x128xf32>,
    return
  }
  func.func @transform_0(%arg0: i32) -> (i32, i32) {
    %c0_i32 = arith.constant 0 : i32
    %c0_i32_0 = arith.constant 0 : i32
    return %arg0, %c0_i32 : i32, i32
  }
  func.func @transform_1(%arg0: i32) -> (i32, i32) {
    %c0_i32 = arith.constant 0 : i32
    %c0_i32_0 = arith.constant 0 : i32
    %c0_i32_1 = arith.constant 0 : i32
    return %c0_i32, %c0_i32_0 : i32, i32
  }
  func.func @transform_2(%arg0: i32) -> (i32, i32) {
    %c0_i32 = arith.constant 0 : i32
    %c0_i32_0 = arith.constant 0 : i32
    %c0_i32_1 = arith.constant 0 : i32
    return %c0_i32, %c0_i32_0 : i32, i32
  }
  func.func @transform_3(%arg0: i32) -> (i32, i32) {
    %c0_i32 = arith.constant 0 : i32
    %c0_i32_0 = arith.constant 0 : i32
    %c0_i32_1 = arith.constant 0 : i32
    return %c0_i32, %c0_i32_0 : i32, i32
  }
  func.func @transform_4(%arg0: i32) -> (i32, i32) {
    %c0_i32 = arith.constant 0 : i32
    %c0_i32_0 = arith.constant 0 : i32
    return %arg0, %c0_i32 : i32, i32
  }
}

</mosaic_0001>

<llo_original>
// kernel: tpu_custom_call.1
$region0: #{tpu_custom_call.1}
  #allocation0 [shape = 'u32[]', space=smem, size = 0x4, offset = 0x4, fixed_abs, tag = 'smem constant byte address 0x4 - core index']
  #allocation1 [shape = 'u32[144,128]{1,0:T(1,128)}', space=vmem, size = 0x12000, scoped, tag = 'internal scratch']
  #allocation2 [shape = 'f32[32,512]{1,0:T(8,128)}', space=vmem, size = 0x10000, scoped, tag = 'scratch operand']
  #allocation3 [shape = 'f32[8,128]{1,0:T(8,128)}', space=vmem, size = 0x1000, scoped, tag = 'scratch operand']
  #allocation4 [shape = 'f32[8,128]{1,0:T(8,128)}', space=vmem, size = 0x1000, scoped, tag = 'scratch operand']
  %s0 = inlined_call_operand.hbm [shape: bf16[64,64], index: 0, kind: input, shape index: {}]
  %s1 = inlined_call_operand.hbm [shape: bf16[64,512], index: 1, kind: input, shape index: {}]
  %s2 = inlined_call_operand.hbm [shape: f32[1,512], index: 2, kind: input, shape index: {}]
  %s3 = inlined_call_operand.hbm [shape: bf16[128,512], index: 3, kind: input, shape index: {}]
  %s4 = inlined_call_operand.hbm [shape: f32[64,128], index: 4, kind: output, shape index: {}]
  %s5 = sld [smem:[#allocation0]]
  $region69: #{tpu_custom_call.1} parent=0
    _
  %s7 = ssub.s32 1, %s5
  %s8 = scalar_select 0, %s7, %s5
  $region1: #{tpu_custom_call.1} parent=0
    #allocation5 [shape = 'u8[16384]{0}', space=vmem, size = 0x4000, scoped, tag = 'input window, operand 0']
    #allocation6 [shape = 's32[2]{0}', space=sflag, size = 0x8, scoped, tag = 'scoped memory for tpu_custom_call.1']
    #allocation7 [shape = 's32[2]{0}', space=sflag, size = 0x8, scoped, tag = 'scoped memory for tpu_custom_call.1']
    #allocation8 [shape = 'u8[65536]{0}', space=vmem, size = 0x10000, scoped, tag = 'input window, operand 1, single buffered']
    #allocation9 [shape = 's32[1]{0}', space=sflag, size = 0x4, scoped, tag = 'scoped memory for tpu_custom_call.1']
    #allocation10 [shape = 'u8[2048]{0}', space=vmem, size = 0x800, scoped, tag = 'input window, operand 2, single buffered']
    #allocation11 [shape = 'u8[131072]{0}', space=vmem, size = 0x20000, scoped, tag = 'input window, operand 3, single buffered']
    #allocation12 [shape = 's32[1]{0}', space=sflag, size = 0x4, scoped, tag = 'scoped memory for tpu_custom_call.1']
    #allocation13 [shape = 'u8[32768]{0}', space=vmem, size = 0x8000, scoped, tag = 'output window, operand 0']
    %9 = vsyncpa [#allocation6], 0
    %s10 = scalar_lea.sflag [#allocation6], 1
    %11 = vsyncpa %s10, 0
    %12 = vsyncpa [#allocation9], 0
    %13 = vsyncpa [#allocation12], 0
    %14 = vsyncpa [#allocation7], 0
    %s15 = scalar_lea.sflag [#allocation7], 1
    %16 = vsyncpa %s15, 0
    loop: start=0, step=1, limit=4
    $region2: #{tpu_custom_call.1} parent=1 // loop_pre_header
      _
    $region3: #{tpu_custom_call.1} parent=1 // loop_header
      %s18 = sphi 0, %s22
      %p19 = scmp.ge.s32.totalorder %s18, 4
      %s28 = sphi 0, %s30
      %s31 = sphi 0, %s28
      %s32 = sphi 0, %s31
      %s48 = sphi 0, %s32
      %s52 = sphi 0, %s52
      %s54 = sphi 0, %s52
      %s55 = sphi 0, %s54
      %s69 = sphi 0, %s55
      %s73 = sphi 0, %s73
      %s75 = sphi 0, %s73
      %s76 = sphi 0, %s75
      %s90 = sphi 0, %s76
      %s94 = sphi 0, %s94
      %s96 = sphi 0, %s94
      %s97 = sphi 0, %s96
      %s111 = sphi 0, %s97
      %s117 = sphi 0, %s119
      %s120 = sphi 0, %s117
      %s121 = sphi 0, %s120
      %s137 = sphi 0, %s121
    $region4: #{tpu_custom_call.1} parent=1 // loop_header_branch
      %21 = sbr.rel (%p19) target = $region8
    $region5: #{tpu_custom_call.1} parent=1 // loop_body
      %s23 = ssub.s32 %s18, 1
      %s24 = ssub.s32 %s18, 2
      %s25 = sadd.s32 %s18, 1
      %s26 = ssub.s32 %s18, %s25
      %p27 = scmp.eq.s32.totalorder %s26, 0
      %s29 = sadd.s32 %s28, 1
      %s30 = scalar_select %p27, %s28, %s29
      %p33 = pneg %p27
      %p34 = scmp.eq.s32.totalorder %s18, 1
      %p35 = por %p33, %p34
      %p36 = scmp.ne.s32.totalorder %s28, %s31
      %p37 = scmp.eq.s32.totalorder %s18, 0
      %p38 = por %p36, %p37
      %p39 = scmp.ne.s32.totalorder %s28, %s31
      %p40 = scmp.eq.s32.totalorder %s23, 1
      %p41 = por %p39, %p40
      %p42 = scmp.ne.s32.totalorder %s31, %s32
      %p43 = scmp.eq.s32.totalorder %s23, 0
      %p44 = por %p42, %p43
      %p45 = scmp.ne.s32.totalorder %s31, %s32
      %p46 = scmp.eq.s32.totalorder %s24, 1
      %p47 = por %p45, %p46
      %p49 = scmp.ne.s32.totalorder %s32, %s48
      %p50 = scmp.eq.s32.totalorder %s24, 0
      %p51 = por %p49, %p50
      %s53 = sadd.s32 %s52, 1
      %p56 = scmp.eq.s32.totalorder %s18, 1
      %p57 = scmp.ne.s32.totalorder %s52, %s54
      %p58 = scmp.eq.s32.totalorder %s18, 0
      %p59 = por %p57, %p58
      %p60 = scmp.ne.s32.totalorder %s52, %s54
      %p61 = scmp.eq.s32.totalorder %s23, 1
      %p62 = por %p60, %p61
      %p63 = scmp.ne.s32.totalorder %s54, %s55
      %p64 = scmp.eq.s32.totalorder %s23, 0
      %p65 = por %p63, %p64
      %p66 = scmp.ne.s32.totalorder %s54, %s55
      %p67 = scmp.eq.s32.totalorder %s24, 1
      %p68 = por %p66, %p67
      %p70 = scmp.ne.s32.totalorder %s55, %s69
      %p71 = scmp.eq.s32.totalorder %s24, 0
      %p72 = por %p70, %p71
      %s74 = sadd.s32 %s73, 1
      %p77 = scmp.eq.s32.totalorder %s18, 1
      %p78 = scmp.ne.s32.totalorder %s73, %s75
      %p79 = scmp.eq.s32.totalorder %s18, 0
      %p80 = por %p78, %p79
      %p81 = scmp.ne.s32.totalorder %s73, %s75
      %p82 = scmp.eq.s32.totalorder %s23, 1
      %p83 = por %p81, %p82
      %p84 = scmp.ne.s32.totalorder %s75, %s76
      %p85 = scmp.eq.s32.totalorder %s23, 0
      %p86 = por %p84, %p85
      %p87 = scmp.ne.s32.totalorder %s75, %s76
      %p88 = scmp.eq.s32.totalorder %s24, 1
      %p89 = por %p87, %p88
      %p91 = scmp.ne.s32.totalorder %s76, %s90
      %p92 = scmp.eq.s32.totalorder %s24, 0
      %p93 = por %p91, %p92
      %s95 = sadd.s32 %s94, 1
      %p98 = scmp.eq.s32.totalorder %s18, 1
      %p99 = scmp.ne.s32.totalorder %s94, %s96
      %p100 = scmp.eq.s32.totalorder %s18, 0
      %p101 = por %p99, %p100
      %p102 = scmp.ne.s32.totalorder %s94, %s96
      %p103 = scmp.eq.s32.totalorder %s23, 1
      %p104 = por %p102, %p103
      %p105 = scmp.ne.s32.totalorder %s96, %s97
      %p106 = scmp.eq.s32.totalorder %s23, 0
      %p107 = por %p105, %p106
      %p108 = scmp.ne.s32.totalorder %s96, %s97
      %p109 = scmp.eq.s32.totalorder %s24, 1
      %p110 = por %p108, %p109
      %p112 = scmp.ne.s32.totalorder %s97, %s111
      %p113 = scmp.eq.s32.totalorder %s24, 0
      %p114 = por %p112, %p113
      %s115 = ssub.s32 %s18, %s25
      %p116 = scmp.eq.s32.totalorder %s115, 0
      %s118 = sadd.s32 %s117, 1
      %s119 = scalar_select %p116, %s117, %s118
      %p122 = pneg %p116
      %p123 = scmp.eq.s32.totalorder %s18, 1
      %p124 = por %p122, %p123
      %p125 = scmp.ne.s32.totalorder %s117, %s120
      %p126 = scmp.eq.s32.totalorder %s18, 0
      %p127 = por %p125, %p126
      %p128 = scmp.ne.s32.totalorder %s117, %s120
      %p129 = scmp.eq.s32.totalorder %s23, 1
      %p130 = por %p128, %p129
      %p131 = scmp.ne.s32.totalorder %s120, %s121
      %p132 = scmp.eq.s32.totalorder %s23, 0
      %p133 = por %p131, %p132
      %p134 = scmp.ne.s32.totalorder %s120, %s121
      %p135 = scmp.eq.s32.totalorder %s24, 1
      %p136 = por %p134, %p135
      %p138 = scmp.ne.s32.totalorder %s121, %s137
      %p139 = scmp.eq.s32.totalorder %s24, 0
      %p140 = por %p138, %p139
      %p141 = scmp.le.s32.totalorder 1, %s18
      %p142 = scmp.lt.s32.totalorder %s18, 3
      %p143 = pnand %p141, %p142
      %p144 = pneg %p143
      // Predicated region
      $region9: #{tpu_custom_call.1} parent=5 // pred_check
        _
      $region10: #{tpu_custom_call.1} parent=5 // pred_check_branch
        %146 = sbr.rel (%p143) target = $region12
      $region11: #{tpu_custom_call.1} parent=5 // pred_region
        %s147 = ssub.s32 %s18, 1
        // Predicated region
        $region13: #{tpu_custom_call.1} parent=11 // pred_check
          %p148 = pneg %p65
        $region14: #{tpu_custom_call.1} parent=11 // pred_check_branch
          %150 = sbr.rel (%p148) target = $region16
        $region15: #{tpu_custom_call.1} parent=11 // pred_region
          %s152 = ssub.s32 2048, 2048
          %153 = vsyncadd [#allocation9], %s152
          %s154 = sshll.u32 [#allocation8], 4
          %s155 = int_to_ptr.vmem [resolvable:$true] %s154
          %160 = dma.hbm_to_vmem [thread:$0]  %s1, 2048, %s155, [#allocation9], 256, 256, 16
        $region16: #{tpu_custom_call.1} parent=11 // pred_fallthru
          _
        // Predicated region
        $region17: #{tpu_custom_call.1} parent=11 // pred_check
          %p161 = pneg %p86
        $region18: #{tpu_custom_call.1} parent=11 // pred_check_branch
          %163 = sbr.rel (%p161) target = $region20
        $region19: #{tpu_custom_call.1} parent=11 // pred_region
          %s165 = ssub.s32 64, 64
          %166 = vsyncadd [#allocation9], %s165
          %s168 = sshll.u32 [#allocation10], 4
          %s169 = int_to_ptr.vmem [resolvable:$true] %s168
          %171 = dma.hbm_to_vmem [thread:$0]  %s2, 64, %s169, [#allocation9]
        $region20: #{tpu_custom_call.1} parent=11 // pred_fallthru
          _
        // Predicated region
        $region21: #{tpu_custom_call.1} parent=11 // pred_check
          %p172 = pneg %p107
        $region22: #{tpu_custom_call.1} parent=11 // pred_check_branch
          %174 = sbr.rel (%p172) target = $region24
        $region23: #{tpu_custom_call.1} parent=11 // pred_region
          %s176 = ssub.s32 4096, 4096
          %177 = vsyncadd [#allocation12], %s176
          %s178 = sshll.u32 [#allocation11], 4
          %s179 = int_to_ptr.vmem [resolvable:$true] %s178
          %184 = dma.hbm_to_vmem [thread:$0]  %s3, 4096, %s179, [#allocation12], 256, 256, 16
        $region24: #{tpu_custom_call.1} parent=11 // pred_fallthru
          _
      $region12: #{tpu_custom_call.1} parent=5 // pred_fallthru
        _
      %p185 = scmp.lt.s32.totalorder %s18, 2
      // Predicated region
      $region25: #{tpu_custom_call.1} parent=5 // pred_check
        %p186 = pneg %p185
      $region26: #{tpu_custom_call.1} parent=5 // pred_check_branch
        %188 = sbr.rel (%p186) target = $region28
      $region27: #{tpu_custom_call.1} parent=5 // pred_region
        // Predicated region
        $region29: #{tpu_custom_call.1} parent=27 // pred_check
          %p189 = pneg %p38
        $region30: #{tpu_custom_call.1} parent=27 // pred_check_branch
          %191 = sbr.rel (%p189) target = $region32
        $region31: #{tpu_custom_call.1} parent=27 // pred_region
          %s192 = sand.u32 %s28, 1
          %s193 = scalar_lea.sflag [#allocation6], %s192
          %s194 = sand.u32 %s28, 1
          %s195 = smul.addr %s194, 16
          %s196 = scalar_lea.vmem [#allocation5], %s195
          %s197 = smul.u32 4, %s18
          %s199 = ssub.s32 256, 256
          %200 = vsyncadd %s193, %s199
          %s201 = smul.addr %s197, 64
          %s202 = scalar_lea.hbm %s0, %s201
          %s203 = sshll.u32 %s196, 4
          %s204 = int_to_ptr.vmem [resolvable:$true] %s203
          %209 = dma.hbm_to_vmem [thread:$0]  %s202, 256, %s204, %s193, 64, 64, 4
        $region32: #{tpu_custom_call.1} parent=27 // pred_fallthru
          _
      $region28: #{tpu_custom_call.1} parent=5 // pred_fallthru
        _
      %p210 = scmp.le.s32.totalorder 1, %s18
      %p211 = scmp.lt.s32.totalorder %s18, 3
      %p212 = pnand %p210, %p211
      %p213 = pneg %p212
      // Predicated region
      $region33: #{tpu_custom_call.1} parent=5 // pred_check
        _
      $region34: #{tpu_custom_call.1} parent=5 // pred_check_branch
        %215 = sbr.rel (%p212) target = $region36
      $region35: #{tpu_custom_call.1} parent=5 // pred_region
        %s216 = ssub.s32 %s18, 1
        %s217 = sand.u32 %s31, 1
        %s218 = scalar_lea.sflag [#allocation6], %s217
        %s219 = sand.u32 %s31, 1
        %s220 = smul.addr %s219, 16
        %s221 = scalar_lea.vmem [#allocation5], %s220
        // Predicated region
        $region37: #{tpu_custom_call.1} parent=35 // pred_check
          %p222 = pneg %p44
        $region38: #{tpu_custom_call.1} parent=35 // pred_check_branch
          %224 = sbr.rel (%p222) target = $region40
        $region39: #{tpu_custom_call.1} parent=35 // pred_region
          %225 = dma.done %s218, 256
        $region40: #{tpu_custom_call.1} parent=35 // pred_fallthru
          _
        // Predicated region
        $region41: #{tpu_custom_call.1} parent=35 // pred_check
          %p226 = pneg %p65
        $region42: #{tpu_custom_call.1} parent=35 // pred_check_branch
          %228 = sbr.rel (%p226) target = $region44
        $region43: #{tpu_custom_call.1} parent=35 // pred_region
          %229 = dma.done [#allocation9], 2048
        $region44: #{tpu_custom_call.1} parent=35 // pred_fallthru
          _
        // Predicated region
        $region45: #{tpu_custom_call.1} parent=35 // pred_check
          %p230 = pneg %p86
        $region46: #{tpu_custom_call.1} parent=35 // pred_check_branch
          %232 = sbr.rel (%p230) target = $region48
        $region47: #{tpu_custom_call.1} parent=35 // pred_region
          %233 = dma.done [#allocation9], 64
        $region48: #{tpu_custom_call.1} parent=35 // pred_fallthru
          _
        // Predicated region
        $region49: #{tpu_custom_call.1} parent=35 // pred_check
          %p234 = pneg %p107
        $region50: #{tpu_custom_call.1} parent=35 // pred_check_branch
          %236 = sbr.rel (%p234) target = $region52
        $region51: #{tpu_custom_call.1} parent=35 // pred_region
          %237 = dma.done [#allocation12], 4096
        $region52: #{tpu_custom_call.1} parent=35 // pred_fallthru
          _
        %s238 = sand.u32 %s31, 1
        %s239 = scalar_lea.sflag [#allocation6], %s238
        %s240 = sand.u32 %s31, 1
        %s241 = smul.addr %s240, 16
        %s242 = scalar_lea.vmem [#allocation5], %s241
        %p243 = pneg %p44
        %p244 = pneg %p41
        %p245 = pneg %p65
        %p246 = pneg %p62
        %p247 = pneg %p86
        %p248 = pneg %p83
        %p249 = pneg %p107
        %p250 = pneg %p104
        %p251 = pneg %p133
        %p252 = pneg %p130
        %s253 = sand.u32 %s120, 1
        %s254 = scalar_lea.sflag [#allocation7], %s253
        %s255 = sand.u32 %s120, 1
        %s256 = smul.addr %s255, 32
        %s257 = scalar_lea.vmem [#allocation13], %s256
        %s258 = smul.u32 4, %s23
        %s259 = smul.u32 4, %s23
        %p261 = scmp.eq.s32.totalorder %s23, 0
        // Predicated region
        $region53: #{tpu_custom_call.1} parent=35 // pred_check
          %p262 = pneg %p261
        $region54: #{tpu_custom_call.1} parent=35 // pred_check_branch
          %264 = sbr.rel (%p262) target = $region56
        $region55: #{tpu_custom_call.1} parent=35 // pred_region
          %265 = vst [vmem:[#allocation3] sm:$0xff] 0.0
          %266 = vst [vmem:[#allocation4] sm:$0xff] 0.0
        $region56: #{tpu_custom_call.1} parent=35 // pred_fallthru
          _
        %v267 = vld [vmem:[%s221] sm:$0xf]
        %v268 = vld [vmem:[%s221 + $0x4] sm:$0xf]
        %v269 = vld [vmem:[%s221 + $0x8] sm:$0xf]
        %v270 = vld [vmem:[%s221 + $0xc] sm:$0xf]
        %v271 = vld [vmem:[#allocation8] sm:$0xff]
        %v272 = vld [vmem:[#allocation8 + $0x8] sm:$0xff]
        %v273 = vld [vmem:[#allocation8 + $0x10] sm:$0xff]
        %v274 = vld [vmem:[#allocation8 + $0x18] sm:$0xff]
        %v275 = vld [vmem:[#allocation8 + $0x20] sm:$0xff]
        %v276 = vld [vmem:[#allocation8 + $0x28] sm:$0xff]
        %v277 = vld [vmem:[#allocation8 + $0x30] sm:$0xff]
        %v278 = vld [vmem:[#allocation8 + $0x38] sm:$0xff]
        %v279 = vld [vmem:[#allocation8 + $0x40] sm:$0xff]
        %v280 = vld [vmem:[#allocation8 + $0x48] sm:$0xff]
        %v281 = vld [vmem:[#allocation8 + $0x50] sm:$0xff]
        %v282 = vld [vmem:[#allocation8 + $0x58] sm:$0xff]
        %v283 = vld [vmem:[#allocation8 + $0x60] sm:$0xff]
        %v284 = vld [vmem:[#allocation8 + $0x68] sm:$0xff]
        %v285 = vld [vmem:[#allocation8 + $0x70] sm:$0xff]
        %v286 = vld [vmem:[#allocation8 + $0x78] sm:$0xff]
        %v287 = vld [vmem:[#allocation10] sm:$0xf]
        %v289 = vlaneseq
        %v290 = vshrl.u32 %v289, 7
        %v291 = vsub.s32 0, %v290
        %v292 = vrot.slane %v287, %v291
        %v293 = vlaneseq
        %v294 = vshrl.u32 %v293, 7
        %v295 = vsub.s32 1, %v294
        %v296 = vrot.slane %v287, %v295
        %v297 = vlaneseq
        %v298 = vshrl.u32 %v297, 7
        %v299 = vsub.s32 2, %v298
        %v300 = vrot.slane %v287, %v299
        %v301 = vlaneseq
        %v302 = vshrl.u32 %v301, 7
        %v303 = vsub.s32 3, %v302
        %v304 = vrot.slane %v287, %v303
        %v313 = vunpack.c.l.b16 %v267
        %v314 = vunpack.c.l.b16 %v268
        %v315 = vunpack.c.l.b16 %v269
        %v316 = vunpack.c.l.b16 %v270
        %v317 = vpack.c.b16 %v314, %v313
        %v318 = vpack.c.b16 %v316, %v315
        %v335 = vunpack.c.l.b16 %v271
        %v336 = vunpack.c.h.b16 %v271
        %v337 = vunpack.c.l.b16 %v272
        %v338 = vunpack.c.h.b16 %v272
        %v339 = vunpack.c.l.b16 %v273
        %v340 = vunpack.c.h.b16 %v273
        %v341 = vunpack.c.l.b16 %v274
        %v342 = vunpack.c.h.b16 %v274
        %v343 = vunpack.c.l.b16 %v275
        %v344 = vunpack.c.h.b16 %v275
        %v345 = vunpack.c.l.b16 %v276
        %v346 = vunpack.c.h.b16 %v276
        %v347 = vunpack.c.l.b16 %v277
        %v348 = vunpack.c.h.b16 %v277
        %v349 = vunpack.c.l.b16 %v278
        %v350 = vunpack.c.h.b16 %v278
        %v351 = vunpack.c.l.b16 %v279
        %v352 = vunpack.c.h.b16 %v279
        %v353 = vunpack.c.l.b16 %v280
        %v354 = vunpack.c.h.b16 %v280
        %v355 = vunpack.c.l.b16 %v281
        %v356 = vunpack.c.h.b16 %v281
        %v357 = vunpack.c.l.b16 %v282
        %v358 = vunpack.c.h.b16 %v282
        %v359 = vunpack.c.l.b16 %v283
        %v360 = vunpack.c.h.b16 %v283
        %v361 = vunpack.c.l.b16 %v284
        %v362 = vunpack.c.h.b16 %v284
        %v363 = vunpack.c.l.b16 %v285
        %v364 = vunpack.c.h.b16 %v285
        %v365 = vunpack.c.l.b16 %v286
        %v366 = vunpack.c.h.b16 %v286
        %v367 = vpack.c.b16 %v339, %v335
        %v368 = vpack.c.b16 %v340, %v336
        %v369 = vpack.c.b16 %v341, %v337
        %v370 = vpack.c.b16 %v342, %v338
        %v371 = vpack.c.b16 %v347, %v343
        %v372 = vpack.c.b16 %v348, %v344
        %v373 = vpack.c.b16 %v349, %v345
        %v374 = vpack.c.b16 %v350, %v346
        %v375 = vpack.c.b16 %v355, %v351
        %v376 = vpack.c.b16 %v356, %v352
        %v377 = vpack.c.b16 %v357, %v353
        %v378 = vpack.c.b16 %v358, %v354
        %v379 = vpack.c.b16 %v363, %v359
        %v380 = vpack.c.b16 %v364, %v360
        %v381 = vpack.c.b16 %v365, %v361
        %v382 = vpack.c.b16 %v366, %v362
        %vm399 = vcmask 523264
        %v401 = vsel %vm399, %v317, 0
        %v404 = vsel %vm399, %v318, 0
        %406 = vmatprep.subr.bf16.mxu0 0
        %407 = vmatpush1.bf16.msra.mxu0 0
        %408 = vmatprep.subr.bf16.mxu0 0
        %409 = vmatpush1.bf16.msra.mxu0 0
        %410 = vmatprep.subr.bf16.mxu0 0
        %411 = vmatpush1.bf16.msra.mxu0 0
        %412 = vmatprep.subr.bf16.mxu0 0
        %413 = vmatpush1.bf16.msra.mxu0 0
        %414 = vmatprep.subr.bf16.mxu0 %v380
        %415 = vmatpush1.bf16.msra.mxu0 %v379
        %416 = vmatprep.subr.bf16.mxu0 %v376
        %417 = vmatpush1.bf16.msra.mxu0 %v375
        %418 = vmatprep.subr.bf16.mxu0 %v372
        %419 = vmatpush1.bf16.msra.mxu0 %v371
        %420 = vmatprep.subr.bf16.mxu0 %v368
        %421 = vmatpush1.bf16.msra.mxu0 %v367
        %422 = vmatprep.subr.bf16.mxu0 0
        %423 = vmatpush2.bf16.msra.mxu0 0
        %424 = vmatprep.subr.bf16.mxu0 0
        %425 = vmatpush2.bf16.msra.mxu0 0
        %426 = vmatprep.subr.bf16.mxu0 0
        %427 = vmatpush2.bf16.msra.mxu0 0
        %428 = vmatprep.subr.bf16.mxu0 0
        %429 = vmatpush2.bf16.msra.mxu0 0
        %430 = vmatprep.subr.bf16.mxu0 0
        %431 = vmatpush2.bf16.msra.mxu0 0
        %432 = vmatprep.subr.bf16.mxu0 0
        %433 = vmatpush2.bf16.msra.mxu0 0
        %434 = vmatprep.subr.bf16.mxu0 0
        %435 = vmatpush2.bf16.msra.mxu0 0
        %436 = vmatprep.subr.bf16.mxu0 0
        %437 = vmatpush2.bf16.msra.mxu0 0
        %438 = vmatprep.mubr.bf16.mxu0 0
        %439 = vmatmul.mubr.bf16.gmra.mxu0 %v401
        %v440 = vpop.f32.mrf.mxu0
        %v441 = vadd.f32 %v292, %v440
        %v442 = vpop.f32.mrf.mxu0
        %v443 = vadd.f32 %v296, %v442
        %v444 = vpop.f32.mrf.mxu0
        %v445 = vadd.f32 %v292, %v444
        %v446 = vpop.f32.mrf.mxu0
        %v447 = vadd.f32 %v296, %v446
        %448 = vmatprep.mubr.bf16.mxu0 0
        %449 = vmatmul.mubr.bf16.gmra.mxu0 %v404
        %v450 = vpop.f32.mrf.mxu0
        %v451 = vadd.f32 %v292, %v450
        %v452 = vpop.f32.mrf.mxu0
        %v453 = vadd.f32 %v296, %v452
        %v454 = vpop.f32.mrf.mxu0
        %v455 = vadd.f32 %v292, %v454
        %v456 = vpop.f32.mrf.mxu0
        %v457 = vadd.f32 %v296, %v456
        %458 = vdwg.mxu0
        %459 = vmatprep.subr.bf16.mxu0 0
        %460 = vmatpush1.bf16.msra.mxu0 0
        %461 = vmatprep.subr.bf16.mxu0 0
        %462 = vmatpush1.bf16.msra.mxu0 0
        %463 = vmatprep.subr.bf16.mxu0 0
        %464 = vmatpush1.bf16.msra.mxu0 0
        %465 = vmatprep.subr.bf16.mxu0 0
        %466 = vmatpush1.bf16.msra.mxu0 0
        %467 = vmatprep.subr.bf16.mxu0 %v382
        %468 = vmatpush1.bf16.msra.mxu0 %v381
        %469 = vmatprep.subr.bf16.mxu0 %v378
        %470 = vmatpush1.bf16.msra.mxu0 %v377
        %471 = vmatprep.subr.bf16.mxu0 %v374
        %472 = vmatpush1.bf16.msra.mxu0 %v373
        %473 = vmatprep.subr.bf16.mxu0 %v370
        %474 = vmatpush1.bf16.msra.mxu0 %v369
        %475 = vmatprep.subr.bf16.mxu0 0
        %476 = vmatpush2.bf16.msra.mxu0 0
        %477 = vmatprep.subr.bf16.mxu0 0
        %478 = vmatpush2.bf16.msra.mxu0 0
        %479 = vmatprep.subr.bf16.mxu0 0
        %480 = vmatpush2.bf16.msra.mxu0 0
        %481 = vmatprep.subr.bf16.mxu0 0
        %482 = vmatpush2.bf16.msra.mxu0 0
        %483 = vmatprep.subr.bf16.mxu0 0
        %484 = vmatpush2.bf16.msra.mxu0 0
        %485 = vmatprep.subr.bf16.mxu0 0
        %486 = vmatpush2.bf16.msra.mxu0 0
        %487 = vmatprep.subr.bf16.mxu0 0
        %488 = vmatpush2.bf16.msra.mxu0 0
        %489 = vmatprep.subr.bf16.mxu0 0
        %490 = vmatpush2.bf16.msra.mxu0 0
        %491 = vmatprep.mubr.bf16.mxu0 0
        %492 = vmatmul.mubr.bf16.gmra.mxu0 %v401
        %v493 = vpop.f32.mrf.mxu0
        %v494 = vadd.f32 %v300, %v493
        %v495 = vpop.f32.mrf.mxu0
        %v496 = vadd.f32 %v304, %v495
        %v497 = vpop.f32.mrf.mxu0
        %v498 = vadd.f32 %v300, %v497
        %v499 = vpop.f32.mrf.mxu0
        %v500 = vadd.f32 %v304, %v499
        %501 = vmatprep.mubr.bf16.mxu0 0
        %502 = vmatmul.mubr.bf16.gmra.mxu0 %v404
        %v503 = vpop.f32.mrf.mxu0
        %v504 = vadd.f32 %v300, %v503
        %v505 = vpop.f32.mrf.mxu0
        %v506 = vadd.f32 %v304, %v505
        %v507 = vpop.f32.mrf.mxu0
        %v508 = vadd.f32 %v300, %v507
        %v509 = vpop.f32.mrf.mxu0
        %v510 = vadd.f32 %v304, %v509
        %511 = vdwg.mxu0
        %512 = vst [vmem:[#allocation2] sm:$0xff] %v441
        %513 = vst [vmem:[#allocation2 + $0x8] sm:$0xff] %v443
        %514 = vst [vmem:[#allocation2 + $0x10] sm:$0xff] %v494
        %515 = vst [vmem:[#allocation2 + $0x18] sm:$0xff] %v496
        %516 = vst [vmem:[#allocation2 + $0x20] sm:$0xff] %v445
        %517 = vst [vmem:[#allocation2 + $0x28] sm:$0xff] %v447
        %518 = vst [vmem:[#allocation2 + $0x30] sm:$0xff] %v498
        %519 = vst [vmem:[#allocation2 + $0x38] sm:$0xff] %v500
        %520 = vst [vmem:[#allocation2 + $0x40] sm:$0xff] %v451
        %521 = vst [vmem:[#allocation2 + $0x48] sm:$0xff] %v453
        %522 = vst [vmem:[#allocation2 + $0x50] sm:$0xff] %v504
        %523 = vst [vmem:[#allocation2 + $0x58] sm:$0xff] %v506
        %524 = vst [vmem:[#allocation2 + $0x60] sm:$0xff] %v455
        %525 = vst [vmem:[#allocation2 + $0x68] sm:$0xff] %v457
        %526 = vst [vmem:[#allocation2 + $0x70] sm:$0xff] %v508
        %527 = vst [vmem:[#allocation2 + $0x78] sm:$0xff] %v510
        %v528 = vld [vmem:[#allocation11] sm:$0xff]
        %v529 = vld [vmem:[#allocation11 + $0x8] sm:$0xff]
        %v530 = vld [vmem:[#allocation11 + $0x10] sm:$0xff]
        %v531 = vld [vmem:[#allocation11 + $0x18] sm:$0xff]
        %v532 = vld [vmem:[#allocation11 + $0x20] sm:$0xff]
        %v533 = vld [vmem:[#allocation11 + $0x28] sm:$0xff]
        %v534 = vld [vmem:[#allocation11 + $0x30] sm:$0xff]
        %v535 = vld [vmem:[#allocation11 + $0x38] sm:$0xff]
        %v536 = vld [vmem:[#allocation11 + $0x40] sm:$0xff]
        %v537 = vld [vmem:[#allocation11 + $0x48] sm:$0xff]
        %v538 = vld [vmem:[#allocation11 + $0x50] sm:$0xff]
        %v539 = vld [vmem:[#allocation11 + $0x58] sm:$0xff]
        %v540 = vld [vmem:[#allocation11 + $0x60] sm:$0xff]
        %v541 = vld [vmem:[#allocation11 + $0x68] sm:$0xff]
        %v542 = vld [vmem:[#allocation11 + $0x70] sm:$0xff]
        %v543 = vld [vmem:[#allocation11 + $0x78] sm:$0xff]
        %v544 = vld [vmem:[#allocation11 + $0x80] sm:$0xff]
        %v545 = vld [vmem:[#allocation11 + $0x88] sm:$0xff]
        %v546 = vld [vmem:[#allocation11 + $0x90] sm:$0xff]
        %v547 = vld [vmem:[#allocation11 + $0x98] sm:$0xff]
        %v548 = vld [vmem:[#allocation11 + $0xa0] sm:$0xff]
        %v549 = vld [vmem:[#allocation11 + $0xa8] sm:$0xff]
        %v550 = vld [vmem:[#allocation11 + $0xb0] sm:$0xff]
        %v551 = vld [vmem:[#allocation11 + $0xb8] sm:$0xff]
        %v552 = vld [vmem:[#allocation11 + $0xc0] sm:$0xff]
        %v553 = vld [vmem:[#allocation11 + $0xc8] sm:$0xff]
        %v554 = vld [vmem:[#allocation11 + $0xd0] sm:$0xff]
        %v555 = vld [vmem:[#allocation11 + $0xd8] sm:$0xff]
        %v556 = vld [vmem:[#allocation11 + $0xe0] sm:$0xff]
        %v557 = vld [vmem:[#allocation11 + $0xe8] sm:$0xff]
        %v558 = vld [vmem:[#allocation11 + $0xf0] sm:$0xff]
        %v559 = vld [vmem:[#allocation11 + $0xf8] sm:$0xff]
        %v560 = vld [vmem:[#allocation3] sm:$0xff]
        %v561 = vld [vmem:[#allocation4] sm:$0xff]
        %s562 = smul.u32 0, 4
        %s563 = smul.addr %s562, 8
        %s564 = scalar_lea.vmem [#allocation2], %s563
        %v565 = vld [vmem:[%s564] sm:$0xff]
        %v566 = vld [vmem:[%s564 + $0x8] sm:$0xff]
        %v567 = vld [vmem:[%s564 + $0x10] sm:$0xff]
        %v568 = vld [vmem:[%s564 + $0x18] sm:$0xff]
        %v569 = vpack.c.bf16 %v560, %v560
        %v602 = vunpack.c.l.b16 %v528
        %v603 = vunpack.c.h.b16 %v528
        %v604 = vunpack.c.l.b16 %v529
        %v605 = vunpack.c.h.b16 %v529
        %v606 = vunpack.c.l.b16 %v530
        %v607 = vunpack.c.h.b16 %v530
        %v608 = vunpack.c.l.b16 %v531
        %v609 = vunpack.c.h.b16 %v531
        %v610 = vunpack.c.l.b16 %v532
        %v611 = vunpack.c.h.b16 %v532
        %v612 = vunpack.c.l.b16 %v533
        %v613 = vunpack.c.h.b16 %v533
        %v614 = vunpack.c.l.b16 %v534
        %v615 = vunpack.c.h.b16 %v534
        %v616 = vunpack.c.l.b16 %v535
        %v617 = vunpack.c.h.b16 %v535
        %v618 = vunpack.c.l.b16 %v536
        %v619 = vunpack.c.h.b16 %v536
        %v620 = vunpack.c.l.b16 %v537
        %v621 = vunpack.c.h.b16 %v537
        %v622 = vunpack.c.l.b16 %v538
        %v623 = vunpack.c.h.b16 %v538
        %v624 = vunpack.c.l.b16 %v539
        %v625 = vunpack.c.h.b16 %v539
        %v626 = vunpack.c.l.b16 %v540
        %v627 = vunpack.c.h.b16 %v540
        %v628 = vunpack.c.l.b16 %v541
        %v629 = vunpack.c.h.b16 %v541
        %v630 = vunpack.c.l.b16 %v542
        %v631 = vunpack.c.h.b16 %v542
        %v632 = vunpack.c.l.b16 %v543
        %v633 = vunpack.c.h.b16 %v543
        %v634 = vunpack.c.l.b16 %v544
        %v635 = vunpack.c.h.b16 %v544
        %v636 = vunpack.c.l.b16 %v545
        %v637 = vunpack.c.h.b16 %v545
        %v638 = vunpack.c.l.b16 %v546
        %v639 = vunpack.c.h.b16 %v546
        %v640 = vunpack.c.l.b16 %v547
        %v641 = vunpack.c.h.b16 %v547
        %v642 = vunpack.c.l.b16 %v548
        %v643 = vunpack.c.h.b16 %v548
        %v644 = vunpack.c.l.b16 %v549
        %v645 = vunpack.c.h.b16 %v549
        %v646 = vunpack.c.l.b16 %v550
        %v647 = vunpack.c.h.b16 %v550
        %v648 = vunpack.c.l.b16 %v551
        %v649 = vunpack.c.h.b16 %v551
        %v650 = vunpack.c.l.b16 %v552
        %v651 = vunpack.c.h.b16 %v552
        %v652 = vunpack.c.l.b16 %v553
        %v653 = vunpack.c.h.b16 %v553
        %v654 = vunpack.c.l.b16 %v554
        %v655 = vunpack.c.h.b16 %v554
        %v656 = vunpack.c.l.b16 %v555
        %v657 = vunpack.c.h.b16 %v555
        %v658 = vunpack.c.l.b16 %v556
        %v659 = vunpack.c.h.b16 %v556
        %v660 = vunpack.c.l.b16 %v557
        %v661 = vunpack.c.h.b16 %v557
        %v662 = vunpack.c.l.b16 %v558
        %v663 = vunpack.c.h.b16 %v558
        %v664 = vunpack.c.l.b16 %v559
        %v665 = vunpack.c.h.b16 %v559
        %v666 = vpack.c.b16 %v606, %v602
        %v667 = vpack.c.b16 %v607, %v603
        %v668 = vpack.c.b16 %v608, %v604
        %v669 = vpack.c.b16 %v609, %v605
        %v670 = vpack.c.b16 %v614, %v610
        %v671 = vpack.c.b16 %v615, %v611
        %v672 = vpack.c.b16 %v616, %v612
        %v673 = vpack.c.b16 %v617, %v613
        %v674 = vpack.c.b16 %v622, %v618
        %v675 = vpack.c.b16 %v623, %v619
        %v676 = vpack.c.b16 %v624, %v620
        %v677 = vpack.c.b16 %v625, %v621
        %v678 = vpack.c.b16 %v630, %v626
        %v679 = vpack.c.b16 %v631, %v627
        %v680 = vpack.c.b16 %v632, %v628
        %v681 = vpack.c.b16 %v633, %v629
        %v682 = vpack.c.b16 %v638, %v634
        %v683 = vpack.c.b16 %v639, %v635
        %v684 = vpack.c.b16 %v640, %v636
        %v685 = vpack.c.b16 %v641, %v637
        %v686 = vpack.c.b16 %v646, %v642
        %v687 = vpack.c.b16 %v647, %v643
        %v688 = vpack.c.b16 %v648, %v644
        %v689 = vpack.c.b16 %v649, %v645
        %v690 = vpack.c.b16 %v654, %v650
        %v691 = vpack.c.b16 %v655, %v651
        %v692 = vpack.c.b16 %v656, %v652
        %v693 = vpack.c.b16 %v657, %v653
        %v694 = vpack.c.b16 %v662, %v658
        %v695 = vpack.c.b16 %v663, %v659
        %v696 = vpack.c.b16 %v664, %v660
        %v697 = vpack.c.b16 %v665, %v661
        %730 = vmatprep.subr.bf16.mxu0 %v695
        %731 = vmatpush1.bf16.msra.mxu0 %v694
        %732 = vmatprep.subr.bf16.mxu0 %v691
        %733 = vmatpush1.bf16.msra.mxu0 %v690
        %734 = vmatprep.subr.bf16.mxu0 %v687
        %735 = vmatpush1.bf16.msra.mxu0 %v686
        %736 = vmatprep.subr.bf16.mxu0 %v683
        %737 = vmatpush1.bf16.msra.mxu0 %v682
        %738 = vmatprep.subr.bf16.mxu0 %v679
        %739 = vmatpush1.bf16.msra.mxu0 %v678
        %740 = vmatprep.subr.bf16.mxu0 %v675
        %741 = vmatpush1.bf16.msra.mxu0 %v674
        %742 = vmatprep.subr.bf16.mxu0 %v671
        %743 = vmatpush1.bf16.msra.mxu0 %v670
        %744 = vmatprep.subr.bf16.mxu0 %v667
        %745 = vmatpush1.bf16.msra.mxu0 %v666
        %746 = vmatprep.subr.bf16.mxu0 0
        %747 = vmatpush2.bf16.msra.mxu0 0
        %748 = vmatprep.subr.bf16.mxu0 0
        %749 = vmatpush2.bf16.msra.mxu0 0
        %750 = vmatprep.subr.bf16.mxu0 0
        %751 = vmatpush2.bf16.msra.mxu0 0
        %752 = vmatprep.subr.bf16.mxu0 0
        %753 = vmatpush2.bf16.msra.mxu0 0
        %754 = vmatprep.subr.bf16.mxu0 0
        %755 = vmatpush2.bf16.msra.mxu0 0
        %756 = vmatprep.subr.bf16.mxu0 0
        %757 = vmatpush2.bf16.msra.mxu0 0
        %758 = vmatprep.subr.bf16.mxu0 0
        %759 = vmatpush2.bf16.msra.mxu0 0
        %760 = vmatprep.subr.bf16.mxu0 0
        %761 = vmatpush2.bf16.msra.mxu0 0
        %762 = vmatprep.mubr.bf16.mxu0 0
        %763 = vmatmul.mubr.bf16.gmra.mxu0 %v569
        %v764 = vpop.f32.mrf.mxu0
        %v765 = vadd.f32 0.0, %v764
        %v766 = vpop.f32.mrf.mxu0
        %v767 = vadd.f32 0.0, %v766
        %v768 = vpop.f32.mrf.mxu0
        %v769 = vpop.f32.mrf.mxu0
        %770 = vdwg.mxu0
        %771 = vmatprep.subr.bf16.mxu0 %v697
        %772 = vmatpush1.bf16.msra.mxu0 %v696
        %773 = vmatprep.subr.bf16.mxu0 %v693
        %774 = vmatpush1.bf16.msra.mxu0 %v692
        %775 = vmatprep.subr.bf16.mxu0 %v689
        %776 = vmatpush1.bf16.msra.mxu0 %v688
        %777 = vmatprep.subr.bf16.mxu0 %v685
        %778 = vmatpush1.bf16.msra.mxu0 %v684
        %779 = vmatprep.subr.bf16.mxu0 %v681
        %780 = vmatpush1.bf16.msra.mxu0 %v680
        %781 = vmatprep.subr.bf16.mxu0 %v677
        %782 = vmatpush1.bf16.msra.mxu0 %v676
        %783 = vmatprep.subr.bf16.mxu0 %v673
        %784 = vmatpush1.bf16.msra.mxu0 %v672
        %785 = vmatprep.subr.bf16.mxu0 %v669
        %786 = vmatpush1.bf16.msra.mxu0 %v668
        %787 = vmatprep.subr.bf16.mxu0 0
        %788 = vmatpush2.bf16.msra.mxu0 0
        %789 = vmatprep.subr.bf16.mxu0 0
        %790 = vmatpush2.bf16.msra.mxu0 0
        %791 = vmatprep.subr.bf16.mxu0 0
        %792 = vmatpush2.bf16.msra.mxu0 0
        %793 = vmatprep.subr.bf16.mxu0 0
        %794 = vmatpush2.bf16.msra.mxu0 0
        %795 = vmatprep.subr.bf16.mxu0 0
        %796 = vmatpush2.bf16.msra.mxu0 0
        %797 = vmatprep.subr.bf16.mxu0 0
        %798 = vmatpush2.bf16.msra.mxu0 0
        %799 = vmatprep.subr.bf16.mxu0 0
        %800 = vmatpush2.bf16.msra.mxu0 0
        %801 = vmatprep.subr.bf16.mxu0 0
        %802 = vmatpush2.bf16.msra.mxu0 0
        %803 = vmatprep.mubr.bf16.mxu0 0
        %804 = vmatmul.mubr.bf16.gmra.mxu0 %v569
        %v805 = vpop.f32.mrf.mxu0
        %v806 = vadd.f32 0.0, %v805
        %v807 = vpop.f32.mrf.mxu0
        %v808 = vadd.f32 0.0, %v807
        %v809 = vpop.f32.mrf.mxu0
        %v810 = vpop.f32.mrf.mxu0
        %811 = vdwg.mxu0
        %v812 = vadd.f32 %v565, %v765
        %v813 = vadd.f32 %v566, %v767
        %v814 = vadd.f32 %v567, %v806
        %v815 = vadd.f32 %v568, %v808
        %v816 = vmul.f32 %v812, 0.5
        %v817 = vtanh.pop %v816
        %v818 = vmul.f32 %v817, 0.5
        %v819 = vadd.f32 %v818, 0.5
        %v820 = vmul.f32 %v813, 0.5
        %v821 = vtanh.pop %v820
        %v822 = vmul.f32 %v821, 0.5
        %v823 = vadd.f32 %v822, 0.5
        %v824 = vtanh.pop %v814
        %v825 = vmul.f32 %v815, 0.5
        %v826 = vtanh.pop %v825
        %v827 = vmul.f32 %v826, 0.5
        %v828 = vadd.f32 %v827, 0.5
        %v829 = vmul.f32 %v823, %v561
        %v830 = vmul.f32 %v819, %v824
        %v831 = vadd.f32 %v829, %v830
        %v832 = vtanh.pop %v831
        %v833 = vmul.f32 %v828, %v832
        %834 = vst [vmem:[%s257] sm:$0xff] %v833
        %s835 = smul.u32 1, 4
        %s836 = smul.addr %s835, 8
        %s837 = scalar_lea.vmem [#allocation2], %s836
        %v838 = vld [vmem:[%s837] sm:$0xff]
        %v839 = vld [vmem:[%s837 + $0x8] sm:$0xff]
        %v840 = vld [vmem:[%s837 + $0x10] sm:$0xff]
        %v841 = vld [vmem:[%s837 + $0x18] sm:$0xff]
        %v842 = vpack.c.bf16 %v833, %v833
        %843 = vmatprep.subr.bf16.mxu0 %v695
        %844 = vmatpush1.bf16.msra.mxu0 %v694
        %845 = vmatprep.subr.bf16.mxu0 %v691
        %846 = vmatpush1.bf16.msra.mxu0 %v690
        %847 = vmatprep.subr.bf16.mxu0 %v687
        %848 = vmatpush1.bf16.msra.mxu0 %v686
        %849 = vmatprep.subr.bf16.mxu0 %v683
        %850 = vmatpush1.bf16.msra.mxu0 %v682
        %851 = vmatprep.subr.bf16.mxu0 %v679
        %852 = vmatpush1.bf16.msra.mxu0 %v678
        %853 = vmatprep.subr.bf16.mxu0 %v675
        %854 = vmatpush1.bf16.msra.mxu0 %v674
        %855 = vmatprep.subr.bf16.mxu0 %v671
        %856 = vmatpush1.bf16.msra.mxu0 %v670
        %857 = vmatprep.subr.bf16.mxu0 %v667
        %858 = vmatpush1.bf16.msra.mxu0 %v666
        %859 = vmatprep.subr.bf16.mxu0 0
        %860 = vmatpush2.bf16.msra.mxu0 0
        %861 = vmatprep.subr.bf16.mxu0 0
        %862 = vmatpush2.bf16.msra.mxu0 0
        %863 = vmatprep.subr.bf16.mxu0 0
        %864 = vmatpush2.bf16.msra.mxu0 0
        %865 = vmatprep.subr.bf16.mxu0 0
        %866 = vmatpush2.bf16.msra.mxu0 0
        %867 = vmatprep.subr.bf16.mxu0 0
        %868 = vmatpush2.bf16.msra.mxu0 0
        %869 = vmatprep.subr.bf16.mxu0 0
        %870 = vmatpush2.bf16.msra.mxu0 0
        %871 = vmatprep.subr.bf16.mxu0 0
        %872 = vmatpush2.bf16.msra.mxu0 0
        %873 = vmatprep.subr.bf16.mxu0 0
        %874 = vmatpush2.bf16.msra.mxu0 0
        %875 = vmatprep.mubr.bf16.mxu0 0
        %876 = vmatmul.mubr.bf16.gmra.mxu0 %v842
        %v877 = vpop.f32.mrf.mxu0
        %v878 = vadd.f32 0.0, %v877
        %v879 = vpop.f32.mrf.mxu0
        %v880 = vadd.f32 0.0, %v879
        %v881 = vpop.f32.mrf.mxu0
        %v882 = vpop.f32.mrf.mxu0
        %883 = vdwg.mxu0
        %884 = vmatprep.subr.bf16.mxu0 %v697
        %885 = vmatpush1.bf16.msra.mxu0 %v696
        %886 = vmatprep.subr.bf16.mxu0 %v693
        %887 = vmatpush1.bf16.msra.mxu0 %v692
        %888 = vmatprep.subr.bf16.mxu0 %v689
        %889 = vmatpush1.bf16.msra.mxu0 %v688
        %890 = vmatprep.subr.bf16.mxu0 %v685
        %891 = vmatpush1.bf16.msra.mxu0 %v684
        %892 = vmatprep.subr.bf16.mxu0 %v681
        %893 = vmatpush1.bf16.msra.mxu0 %v680
        %894 = vmatprep.subr.bf16.mxu0 %v677
        %895 = vmatpush1.bf16.msra.mxu0 %v676
        %896 = vmatprep.subr.bf16.mxu0 %v673
        %897 = vmatpush1.bf16.msra.mxu0 %v672
        %898 = vmatprep.subr.bf16.mxu0 %v669
        %899 = vmatpush1.bf16.msra.mxu0 %v668
        %900 = vmatprep.subr.bf16.mxu0 0
        %901 = vmatpush2.bf16.msra.mxu0 0
        %902 = vmatprep.subr.bf16.mxu0 0
        %903 = vmatpush2.bf16.msra.mxu0 0
        %904 = vmatprep.subr.bf16.mxu0 0
        %905 = vmatpush2.bf16.msra.mxu0 0
        %906 = vmatprep.subr.bf16.mxu0 0
        %907 = vmatpush2.bf16.msra.mxu0 0
        %908 = vmatprep.subr.bf16.mxu0 0
        %909 = vmatpush2.bf16.msra.mxu0 0
        %910 = vmatprep.subr.bf16.mxu0 0
        %911 = vmatpush2.bf16.msra.mxu0 0
        %912 = vmatprep.subr.bf16.mxu0 0
        %913 = vmatpush2.bf16.msra.mxu0 0
        %914 = vmatprep.subr.bf16.mxu0 0
        %915 = vmatpush2.bf16.msra.mxu0 0
        %916 = vmatprep.mubr.bf16.mxu0 0
        %917 = vmatmul.mubr.bf16.gmra.mxu0 %v842
        %v918 = vpop.f32.mrf.mxu0
        %v919 = vadd.f32 0.0, %v918
        %v920 = vpop.f32.mrf.mxu0
        %v921 = vadd.f32 0.0, %v920
        %v922 = vpop.f32.mrf.mxu0
        %v923 = vpop.f32.mrf.mxu0
        %924 = vdwg.mxu0
        %v925 = vadd.f32 %v838, %v878
        %v926 = vadd.f32 %v839, %v880
        %v927 = vadd.f32 %v840, %v919
        %v928 = vadd.f32 %v841, %v921
        %v929 = vmul.f32 %v925, 0.5
        %v930 = vtanh.pop %v929
        %v931 = vmul.f32 %v930, 0.5
        %v932 = vadd.f32 %v931, 0.5
        %v933 = vmul.f32 %v926, 0.5
        %v934 = vtanh.pop %v933
        %v935 = vmul.f32 %v934, 0.5
        %v936 = vadd.f32 %v935, 0.5
        %v937 = vtanh.pop %v927
        %v938 = vmul.f32 %v928, 0.5
        %v939 = vtanh.pop %v938
        %v940 = vmul.f32 %v939, 0.5
        %v941 = vadd.f32 %v940, 0.5
        %v942 = vmul.f32 %v936, %v831
        %v943 = vmul.f32 %v932, %v937
        %v944 = vadd.f32 %v942, %v943
        %v945 = vtanh.pop %v944
        %v946 = vmul.f32 %v941, %v945
        %s947 = scalar_lea.vmem %s257, 8 [#allocation13]
        %948 = vst [vmem:[%s947] sm:$0xff] %v946
        %s949 = smul.u32 2, 4
        %s950 = smul.addr %s949, 8
        %s951 = scalar_lea.vmem [#allocation2], %s950
        %v952 = vld [vmem:[%s951] sm:$0xff]
        %v953 = vld [vmem:[%s951 + $0x8] sm:$0xff]
        %v954 = vld [vmem:[%s951 + $0x10] sm:$0xff]
        %v955 = vld [vmem:[%s951 + $0x18] sm:$0xff]
        %v956 = vpack.c.bf16 %v946, %v946
        %957 = vmatprep.subr.bf16.mxu0 %v695
        %958 = vmatpush1.bf16.msra.mxu0 %v694
        %959 = vmatprep.subr.bf16.mxu0 %v691
        %960 = vmatpush1.bf16.msra.mxu0 %v690
        %961 = vmatprep.subr.bf16.mxu0 %v687
        %962 = vmatpush1.bf16.msra.mxu0 %v686
        %963 = vmatprep.subr.bf16.mxu0 %v683
        %964 = vmatpush1.bf16.msra.mxu0 %v682
        %965 = vmatprep.subr.bf16.mxu0 %v679
        %966 = vmatpush1.bf16.msra.mxu0 %v678
        %967 = vmatprep.subr.bf16.mxu0 %v675
        %968 = vmatpush1.bf16.msra.mxu0 %v674
        %969 = vmatprep.subr.bf16.mxu0 %v671
        %970 = vmatpush1.bf16.msra.mxu0 %v670
        %971 = vmatprep.subr.bf16.mxu0 %v667
        %972 = vmatpush1.bf16.msra.mxu0 %v666
        %973 = vmatprep.subr.bf16.mxu0 0
        %974 = vmatpush2.bf16.msra.mxu0 0
        %975 = vmatprep.subr.bf16.mxu0 0
        %976 = vmatpush2.bf16.msra.mxu0 0
        %977 = vmatprep.subr.bf16.mxu0 0
        %978 = vmatpush2.bf16.msra.mxu0 0
        %979 = vmatprep.subr.bf16.mxu0 0
        %980 = vmatpush2.bf16.msra.mxu0 0
        %981 = vmatprep.subr.bf16.mxu0 0
        %982 = vmatpush2.bf16.msra.mxu0 0
        %983 = vmatprep.subr.bf16.mxu0 0
        %984 = vmatpush2.bf16.msra.mxu0 0
        %985 = vmatprep.subr.bf16.mxu0 0
        %986 = vmatpush2.bf16.msra.mxu0 0
        %987 = vmatprep.subr.bf16.mxu0 0
        %988 = vmatpush2.bf16.msra.mxu0 0
        %989 = vmatprep.mubr.bf16.mxu0 0
        %990 = vmatmul.mubr.bf16.gmra.mxu0 %v956
        %v991 = vpop.f32.mrf.mxu0
        %v992 = vadd.f32 0.0, %v991
        %v993 = vpop.f32.mrf.mxu0
        %v994 = vadd.f32 0.0, %v993
        %v995 = vpop.f32.mrf.mxu0
        %v996 = vpop.f32.mrf.mxu0
        %997 = vdwg.mxu0
        %998 = vmatprep.subr.bf16.mxu0 %v697
        %999 = vmatpush1.bf16.msra.mxu0 %v696
        %1000 = vmatprep.subr.bf16.mxu0 %v693
        %1001 = vmatpush1.bf16.msra.mxu0 %v692
        %1002 = vmatprep.subr.bf16.mxu0 %v689
        %1003 = vmatpush1.bf16.msra.mxu0 %v688
        %1004 = vmatprep.subr.bf16.mxu0 %v685
        %1005 = vmatpush1.bf16.msra.mxu0 %v684
        %1006 = vmatprep.subr.bf16.mxu0 %v681
        %1007 = vmatpush1.bf16.msra.mxu0 %v680
        %1008 = vmatprep.subr.bf16.mxu0 %v677
        %1009 = vmatpush1.bf16.msra.mxu0 %v676
        %1010 = vmatprep.subr.bf16.mxu0 %v673
        %1011 = vmatpush1.bf16.msra.mxu0 %v672
        %1012 = vmatprep.subr.bf16.mxu0 %v669
        %1013 = vmatpush1.bf16.msra.mxu0 %v668
        %1014 = vmatprep.subr.bf16.mxu0 0
        %1015 = vmatpush2.bf16.msra.mxu0 0
        %1016 = vmatprep.subr.bf16.mxu0 0
        %1017 = vmatpush2.bf16.msra.mxu0 0
        %1018 = vmatprep.subr.bf16.mxu0 0
        %1019 = vmatpush2.bf16.msra.mxu0 0
        %1020 = vmatprep.subr.bf16.mxu0 0
        %1021 = vmatpush2.bf16.msra.mxu0 0
        %1022 = vmatprep.subr.bf16.mxu0 0
        %1023 = vmatpush2.bf16.msra.mxu0 0
        %1024 = vmatprep.subr.bf16.mxu0 0
        %1025 = vmatpush2.bf16.msra.mxu0 0
        %1026 = vmatprep.subr.bf16.mxu0 0
        %1027 = vmatpush2.bf16.msra.mxu0 0
        %1028 = vmatprep.subr.bf16.mxu0 0
        %1029 = vmatpush2.bf16.msra.mxu0 0
        %1030 = vmatprep.mubr.bf16.mxu0 0
        %1031 = vmatmul.mubr.bf16.gmra.mxu0 %v956
        %v1032 = vpop.f32.mrf.mxu0
        %v1033 = vadd.f32 0.0, %v1032
        %v1034 = vpop.f32.mrf.mxu0
        %v1035 = vadd.f32 0.0, %v1034
        %v1036 = vpop.f32.mrf.mxu0
        %v1037 = vpop.f32.mrf.mxu0
        %1038 = vdwg.mxu0
        %v1039 = vadd.f32 %v952, %v992
        %v1040 = vadd.f32 %v953, %v994
        %v1041 = vadd.f32 %v954, %v1033
        %v1042 = vadd.f32 %v955, %v1035
        %v1043 = vmul.f32 %v1039, 0.5
        %v1044 = vtanh.pop %v1043
        %v1045 = vmul.f32 %v1044, 0.5
        %v1046 = vadd.f32 %v1045, 0.5
        %v1047 = vmul.f32 %v1040, 0.5
        %v1048 = vtanh.pop %v1047
        %v1049 = vmul.f32 %v1048, 0.5
        %v1050 = vadd.f32 %v1049, 0.5
        %v1051 = vtanh.pop %v1041
        %v1052 = vmul.f32 %v1042, 0.5
        %v1053 = vtanh.pop %v1052
        %v1054 = vmul.f32 %v1053, 0.5
        %v1055 = vadd.f32 %v1054, 0.5
        %v1056 = vmul.f32 %v1050, %v944
        %v1057 = vmul.f32 %v1046, %v1051
        %v1058 = vadd.f32 %v1056, %v1057
        %v1059 = vtanh.pop %v1058
        %v1060 = vmul.f32 %v1055, %v1059
        %s1061 = scalar_lea.vmem %s257, 16 [#allocation13]
        %1062 = vst [vmem:[%s1061] sm:$0xff] %v1060
        %s1063 = smul.u32 3, 4
        %s1064 = smul.addr %s1063, 8
        %s1065 = scalar_lea.vmem [#allocation2], %s1064
        %v1066 = vld [vmem:[%s1065] sm:$0xff]
        %v1067 = vld [vmem:[%s1065 + $0x8] sm:$0xff]
        %v1068 = vld [vmem:[%s1065 + $0x10] sm:$0xff]
        %v1069 = vld [vmem:[%s1065 + $0x18] sm:$0xff]
        %v1070 = vpack.c.bf16 %v1060, %v1060
        %1071 = vmatprep.subr.bf16.mxu0 %v695
        %1072 = vmatpush1.bf16.msra.mxu0 %v694
        %1073 = vmatprep.subr.bf16.mxu0 %v691
        %1074 = vmatpush1.bf16.msra.mxu0 %v690
        %1075 = vmatprep.subr.bf16.mxu0 %v687
        %1076 = vmatpush1.bf16.msra.mxu0 %v686
        %1077 = vmatprep.subr.bf16.mxu0 %v683
        %1078 = vmatpush1.bf16.msra.mxu0 %v682
        %1079 = vmatprep.subr.bf16.mxu0 %v679
        %1080 = vmatpush1.bf16.msra.mxu0 %v678
        %1081 = vmatprep.subr.bf16.mxu0 %v675
        %1082 = vmatpush1.bf16.msra.mxu0 %v674
        %1083 = vmatprep.subr.bf16.mxu0 %v671
        %1084 = vmatpush1.bf16.msra.mxu0 %v670
        %1085 = vmatprep.subr.bf16.mxu0 %v667
        %1086 = vmatpush1.bf16.msra.mxu0 %v666
        %1087 = vmatprep.subr.bf16.mxu0 0
        %1088 = vmatpush2.bf16.msra.mxu0 0
        %1089 = vmatprep.subr.bf16.mxu0 0
        %1090 = vmatpush2.bf16.msra.mxu0 0
        %1091 = vmatprep.subr.bf16.mxu0 0
        %1092 = vmatpush2.bf16.msra.mxu0 0
        %1093 = vmatprep.subr.bf16.mxu0 0
        %1094 = vmatpush2.bf16.msra.mxu0 0
        %1095 = vmatprep.subr.bf16.mxu0 0
        %1096 = vmatpush2.bf16.msra.mxu0 0
        %1097 = vmatprep.subr.bf16.mxu0 0
        %1098 = vmatpush2.bf16.msra.mxu0 0
        %1099 = vmatprep.subr.bf16.mxu0 0
        %1100 = vmatpush2.bf16.msra.mxu0 0
        %1101 = vmatprep.subr.bf16.mxu0 0
        %1102 = vmatpush2.bf16.msra.mxu0 0
        %1103 = vmatprep.mubr.bf16.mxu0 0
        %1104 = vmatmul.mubr.bf16.gmra.mxu0 %v1070
        %v1105 = vpop.f32.mrf.mxu0
        %v1106 = vadd.f32 0.0, %v1105
        %v1107 = vpop.f32.mrf.mxu0
        %v1108 = vadd.f32 0.0, %v1107
        %v1109 = vpop.f32.mrf.mxu0
        %v1110 = vpop.f32.mrf.mxu0
        %1111 = vdwg.mxu0
        %1112 = vmatprep.subr.bf16.mxu0 %v697
        %1113 = vmatpush1.bf16.msra.mxu0 %v696
        %1114 = vmatprep.subr.bf16.mxu0 %v693
        %1115 = vmatpush1.bf16.msra.mxu0 %v692
        %1116 = vmatprep.subr.bf16.mxu0 %v689
        %1117 = vmatpush1.bf16.msra.mxu0 %v688
        %1118 = vmatprep.subr.bf16.mxu0 %v685
        %1119 = vmatpush1.bf16.msra.mxu0 %v684
        %1120 = vmatprep.subr.bf16.mxu0 %v681
        %1121 = vmatpush1.bf16.msra.mxu0 %v680
        %1122 = vmatprep.subr.bf16.mxu0 %v677
        %1123 = vmatpush1.bf16.msra.mxu0 %v676
        %1124 = vmatprep.subr.bf16.mxu0 %v673
        %1125 = vmatpush1.bf16.msra.mxu0 %v672
        %1126 = vmatprep.subr.bf16.mxu0 %v669
        %1127 = vmatpush1.bf16.msra.mxu0 %v668
        %1128 = vmatprep.subr.bf16.mxu0 0
        %1129 = vmatpush2.bf16.msra.mxu0 0
        %1130 = vmatprep.subr.bf16.mxu0 0
        %1131 = vmatpush2.bf16.msra.mxu0 0
        %1132 = vmatprep.subr.bf16.mxu0 0
        %1133 = vmatpush2.bf16.msra.mxu0 0
        %1134 = vmatprep.subr.bf16.mxu0 0
        %1135 = vmatpush2.bf16.msra.mxu0 0
        %1136 = vmatprep.subr.bf16.mxu0 0
        %1137 = vmatpush2.bf16.msra.mxu0 0
        %1138 = vmatprep.subr.bf16.mxu0 0
        %1139 = vmatpush2.bf16.msra.mxu0 0
        %1140 = vmatprep.subr.bf16.mxu0 0
        %1141 = vmatpush2.bf16.msra.mxu0 0
        %1142 = vmatprep.subr.bf16.mxu0 0
        %1143 = vmatpush2.bf16.msra.mxu0 0
        %1144 = vmatprep.mubr.bf16.mxu0 0
        %1145 = vmatmul.mubr.bf16.gmra.mxu0 %v1070
        %v1146 = vpop.f32.mrf.mxu0
        %v1147 = vadd.f32 0.0, %v1146
        %v1148 = vpop.f32.mrf.mxu0
        %v1149 = vadd.f32 0.0, %v1148
        %v1150 = vpop.f32.mrf.mxu0
        %v1151 = vpop.f32.mrf.mxu0
        %1152 = vdwg.mxu0
        %v1153 = vadd.f32 %v1066, %v1106
        %v1154 = vadd.f32 %v1067, %v1108
        %v1155 = vadd.f32 %v1068, %v1147
        %v1156 = vadd.f32 %v1069, %v1149
        %v1157 = vmul.f32 %v1153, 0.5
        %v1158 = vtanh.pop %v1157
        %v1159 = vmul.f32 %v1158, 0.5
        %v1160 = vadd.f32 %v1159, 0.5
        %v1161 = vmul.f32 %v1154, 0.5
        %v1162 = vtanh.pop %v1161
        %v1163 = vmul.f32 %v1162, 0.5
        %v1164 = vadd.f32 %v1163, 0.5
        %v1165 = vtanh.pop %v1155
        %v1166 = vmul.f32 %v1156, 0.5
        %v1167 = vtanh.pop %v1166
        %v1168 = vmul.f32 %v1167, 0.5
        %v1169 = vadd.f32 %v1168, 0.5
        %v1170 = vmul.f32 %v1164, %v1058
        %v1171 = vmul.f32 %v1160, %v1165
        %v1172 = vadd.f32 %v1170, %v1171
        %v1173 = vtanh.pop %v1172
        %v1174 = vmul.f32 %v1169, %v1173
        %s1175 = scalar_lea.vmem %s257, 24 [#allocation13]
        %1176 = vst [vmem:[%s1175] sm:$0xff] %v1174
        %1177 = vst [vmem:[#allocation3] sm:$0xff] %v1174
        %1178 = vst [vmem:[#allocation4] sm:$0xff] %v1172
        %s1179 = sand.u32 %s120, 1
        %s1180 = scalar_lea.sflag [#allocation7], %s1179
        %s1181 = sand.u32 %s120, 1
        %s1182 = smul.addr %s1181, 32
        %s1183 = scalar_lea.vmem [#allocation13], %s1182
        // Predicated region
        $region57: #{tpu_custom_call.1} parent=35 // pred_check
          %p1184 = pneg %p130
        $region58: #{tpu_custom_call.1} parent=35 // pred_check_branch
          %1186 = sbr.rel (%p1184) target = $region60
        $region59: #{tpu_custom_call.1} parent=35 // pred_region
          %s1187 = smul.u32 4, %s23
          %s1189 = ssub.s32 512, 512
          %1190 = vsyncadd %s1180, %s1189
          %s1191 = smul.addr %s1187, 128
          %s1192 = scalar_lea.hbm %s4, %s1191
          %s1193 = sshll.u32 %s1183, 4
          %s1194 = int_to_ptr.vmem [resolvable:$true] %s1193
          %1199 = dma.vmem_to_hbm [thread:$0]  %s1194, 512, %s1192, %s1180, 128, 128, 8
        $region60: #{tpu_custom_call.1} parent=35 // pred_fallthru
          _
      $region36: #{tpu_custom_call.1} parent=5 // pred_fallthru
        _
      %p1200 = scmp.le.s32.totalorder 2, %s18
      // Predicated region
      $region61: #{tpu_custom_call.1} parent=5 // pred_check
        %p1201 = pneg %p1200
      $region62: #{tpu_custom_call.1} parent=5 // pred_check_branch
        %1203 = sbr.rel (%p1201) target = $region64
      $region63: #{tpu_custom_call.1} parent=5 // pred_region
        %s1204 = ssub.s32 %s18, 2
        // Predicated region
        $region65: #{tpu_custom_call.1} parent=63 // pred_check
          %p1205 = pneg %p136
        $region66: #{tpu_custom_call.1} parent=63 // pred_check_branch
          %1207 = sbr.rel (%p1205) target = $region68
        $region67: #{tpu_custom_call.1} parent=63 // pred_region
          %s1208 = sand.u32 %s121, 1
          %s1209 = scalar_lea.sflag [#allocation7], %s1208
          %s1210 = sand.u32 %s121, 1
          %s1211 = smul.addr %s1210, 32
          %s1212 = scalar_lea.vmem [#allocation13], %s1211
          %1213 = dma.done %s1209, 512
        $region68: #{tpu_custom_call.1} parent=63 // pred_fallthru
          _
      $region64: #{tpu_custom_call.1} parent=5 // pred_fallthru
        _
    $region6: #{tpu_custom_call.1} parent=1 // loop_footer
      %s22 = sadd.s32 1, %s18
    $region7: #{tpu_custom_call.1} parent=1 // loop_footer_branch
      %17 = sbr.rel target = $region3
    $region8: #{tpu_custom_call.1} parent=1 // loop_exit
      _
    %1214 = vsyncpa [#allocation6], 1
    %s1215 = scalar_lea.sflag [#allocation6], 1
    %1216 = vsyncpa %s1215, 1
    %1217 = vsyncpa [#allocation9], 1
    %1218 = vsyncpa [#allocation12], 1
    %1219 = vsyncpa [#allocation7], 1
    %s1220 = scalar_lea.sflag [#allocation7], 1
    %1221 = vsyncpa %s1220, 1

</llo_original>
